<compile_context>
chip_gen: v5e
topology: v5e:2x2
jax: 0.10.0
libtpu: 0.0.40
codegen_flags: <defaults>
</compile_context>

<pallas_src>
import functools

import jax
import jax.numpy as jnp
from jax.experimental import pallas as pl
from jax.experimental.pallas import tpu as pltpu


def _round_up(x, m):
    return ((x + m - 1) // m) * m


def _lgcn_kernel(r_ref, uego_hbm, iego_hbm,          # inputs
                 uout_ref, iout_ref,                 # outputs (resident layer-sum accumulators)
                 ucur, icur, iacc, uacc, sem,        # scratch
                 *, n_layers, tile):
    l = pl.program_id(0)          # layer
    a = pl.program_id(1)          # user tile (outer)
    b = pl.program_id(2)          # item tile (inner)
    amax = pl.num_programs(1)
    bmax = pl.num_programs(2)

    # ---- very first grid step: DMA ego embeddings into the resident outputs,
    #      seed the bf16 current-layer banks ------------------------------------
    @pl.when(jnp.logical_and(l == 0, jnp.logical_and(a == 0, b == 0)))
    def _():
        cu = pltpu.make_async_copy(uego_hbm, uout_ref, sem.at[0])
        ci = pltpu.make_async_copy(iego_hbm, iout_ref, sem.at[1])
        cu.start()
        ci.start()
        cu.wait()
        ci.wait()
        ucur[...] = uout_ref[...].astype(jnp.bfloat16)
        icur[...] = iout_ref[...].astype(jnp.bfloat16)

    aoff = pl.multiple_of(a * tile, tile)
    boff = pl.multiple_of(b * tile, tile)

    r_tile = r_ref[...]                          # bf16 [tile_u, tile_i]
    u_src = ucur[:, pl.ds(aoff, tile)]           # bf16 [dp, tile], previous layer
    i_src = icur[:, pl.ds(boff, tile)]           # bf16 [dp, tile], previous layer

    # user direction:  u_new[:, a] += i_cur[:, b] @ R[a, b]^T   (contract inner b axis)
    u_part = jax.lax.dot_general(
        i_src, r_tile, dimension_numbers=(((1,), (1,)), ((), ())),
        preferred_element_type=jnp.float32)      # [dp, tile_u] f32

    # item direction:  i_new[:, b] += u_cur[:, a] @ R[a, b]     (contract outer a axis)
    i_part = jax.lax.dot_general(
        u_src, r_tile, dimension_numbers=(((1,), (0,)), ((), ())),
        preferred_element_type=jnp.float32)      # [dp, tile_i] f32

    # --- accumulate the user-direction contraction in a small f32 scratch ------
    @pl.when(b == 0)
    def _():
        uacc[...] = u_part

    @pl.when(b > 0)
    def _():
        uacc[...] = uacc[...] + u_part

    # --- accumulate the item-direction contraction in the full-width f32 bank --
    @pl.when(a == 0)
    def _():
        iacc[:, pl.ds(boff, tile)] = i_part

    @pl.when(a > 0)
    def _():
        iacc[:, pl.ds(boff, tile)] = iacc[:, pl.ds(boff, tile)] + i_part

    # user tile a complete (all item tiles consumed): fold into the running sum
    # and refresh the in-place current bank (this column is not read again this layer).
    @pl.when(b == bmax - 1)
    def _():
        u_new = uacc[...]
        uout_ref[:, pl.ds(aoff, tile)] += u_new
        ucur[:, pl.ds(aoff, tile)] = u_new.astype(jnp.bfloat16)

    # item tile b complete (all user tiles consumed): same fold / refresh.
    @pl.when(a == amax - 1)
    def _():
        i_new = iacc[:, pl.ds(boff, tile)]
        iout_ref[:, pl.ds(boff, tile)] += i_new
        icur[:, pl.ds(boff, tile)] = i_new.astype(jnp.bfloat16)

    # ---- very last grid step: running sum -> mean over (n_layers + 1) terms ----
    @pl.when(jnp.logical_and(l == n_layers - 1,
                             jnp.logical_and(a == amax - 1, b == bmax - 1)))
    def _():
        scale = 1.0 / float(n_layers + 1)
        uout_ref[...] = uout_ref[...] * scale
        iout_ref[...] = iout_ref[...] * scale


def lgcn_forward(r_norm, user_emb, item_emb, n_layers, *, tile=512):
    """LightGCN propagation.

    r_norm:   [user_num, item_num] normalized interaction block (the off-diagonal
              block of the symmetric norm_adj = [[0, R], [R^T, 0]]).
    Returns (user_all_embeddings [U, D], item_all_embeddings [I, D]) as float32.
    """
    u_num, d = user_emb.shape
    i_num, d2 = item_emb.shape
    assert d == d2 and r_norm.shape == (u_num, i_num)

    if n_layers == 0:
        return user_emb.astype(jnp.float32), item_emb.astype(jnp.float32)

    t = int(tile)
    up = _round_up(u_num, t)
    ip = _round_up(i_num, t)
    dp = _round_up(d, 16)          # bf16 LHS packs 16 rows per sublane group
    nu, ni = up // t, ip // t

    # transposed / zero-padded f32 ego embeddings: node axis on the lane dim.
    uego = jnp.zeros((dp, up), jnp.float32).at[:d, :u_num].set(
        user_emb.T.astype(jnp.float32))
    iego = jnp.zeros((dp, ip), jnp.float32).at[:d, :i_num].set(
        item_emb.T.astype(jnp.float32))

    # bf16 user-item block of norm_adj; both propagation directions reuse it.
    r_bf16 = (jnp.zeros((up, ip), jnp.float32)
              .at[:u_num, :i_num].set(r_norm.astype(jnp.float32))
              .astype(jnp.bfloat16))

    # VMEM budget, clamped to the device's capacity (v7x: 64 MiB per TC).
    try:
        vmem_cap = int(pltpu.get_tpu_info().vmem_capacity_bytes)
    except Exception:
        vmem_cap = 64 * 1024 * 1024
    adj_bytes = 2 * t * t * 2                      # double-buffered bf16 R tiles
    out_bytes = 2 * 2 * dp * (up + ip) * 4         # resident f32 outputs (x2 safety)
    bank_bytes = dp * (up + ip) * 2 + dp * ip * 4 + dp * t * 4
    vmem_limit = int(1.25 * (adj_bytes + out_bytes + bank_bytes)) + (4 << 20)
    vmem_limit = min(max(vmem_limit, 32 << 20), vmem_cap - (8 << 20))

    kernel = functools.partial(_lgcn_kernel, n_layers=int(n_layers), tile=t)

    u_out_t, i_out_t = pl.pallas_call(
        kernel,
        out_shape=(jax.ShapeDtypeStruct((dp, up), jnp.float32),
                   jax.ShapeDtypeStruct((dp, ip), jnp.float32)),
        grid_spec=pltpu.PrefetchScalarGridSpec(
            num_scalar_prefetch=0,
            grid=(int(n_layers), nu, ni),
            in_specs=[
                # one streamed R tile per step; reused by both directions
                pl.BlockSpec((t, t), lambda l, a, b: (a, b)),
                # ego embeddings stay in HBM; DMA'd once at the first grid step
                pl.BlockSpec(memory_space=pl.ANY),
                pl.BlockSpec(memory_space=pl.ANY),
            ],
            out_specs=[
                pl.BlockSpec((dp, up), lambda l, a, b: (0, 0)),
                pl.BlockSpec((dp, ip), lambda l, a, b: (0, 0)),
            ],
            scratch_shapes=[
                pltpu.VMEM((dp, up), jnp.bfloat16),   # current-layer user bank
                pltpu.VMEM((dp, ip), jnp.bfloat16),   # current-layer item bank
                pltpu.VMEM((dp, ip), jnp.float32),    # item-direction accumulator
                pltpu.VMEM((dp, t), jnp.float32),     # user-tile accumulator
                pltpu.SemaphoreType.DMA((2,)),        # ego-load DMA semaphores
            ],
        ),
        compiler_params=pltpu.CompilerParams(
            # Every axis carries dependencies through the resident scratch banks /
            # output accumulators -> sequential.
            # TODO(synk): megacore split of the item-tile axis (v7x 2 TCs) would
            #             need the source banks in VMEM_SHARED; not done here.
            dimension_semantics=("arbitrary", "arbitrary", "arbitrary"),
            vmem_limit_bytes=int(vmem_limit),
        ),
    )(r_bf16, uego, iego)

    # back to the module's [nodes, D] layout (wrapper-side layout plumbing)
    user_all = u_out_t[:d, :u_num].T
    item_all = i_out_t[:d, :i_num].T
    return user_all, item_all


def _xavier_uniform(key, shape, dtype=jnp.float32):
    fan_in, fan_out = shape
    bound = (6.0 / (fan_in + fan_out)) ** 0.5
    return jax.random.uniform(key, shape, dtype=dtype, minval=-bound, maxval=bound)


def _build_r_norm(key, user_num, item_num, density=0.1, dtype=jnp.float32):
    """Normalized user-item block of the LightGCN adjacency: D_u^-1/2 R D_i^-1/2."""
    r = (jax.random.uniform(key, (user_num, item_num)) < density).astype(dtype)
    du = jnp.sum(r, axis=1)
    di = jnp.sum(r, axis=0)
    du_is = jnp.where(du > 0, 1.0 / jnp.sqrt(du), 0.0)
    di_is = jnp.where(di > 0, 1.0 / jnp.sqrt(di), 0.0)
    return du_is[:, None] * r * di_is[None, :]


if __name__ == "__main__":
    user_num, item_num, emb_size, n_layers = 48, 80, 32, 2

    key = jax.random.PRNGKey(0)
    k_adj, k_user, k_item = jax.random.split(key, 3)

    r_norm = _build_r_norm(k_adj, user_num, item_num)            # [48, 80]
    user_emb = _xavier_uniform(k_user, (user_num, emb_size))     # [48, 32]
    item_emb = _xavier_uniform(k_item, (item_num, emb_size))     # [80, 32]

    u_out, i_out = lgcn_forward(r_norm, user_emb, item_emb, n_layers, tile=512)
    jax.block_until_ready((u_out, i_out))

    # pure-JAX f32 reference matching the original PyTorch module (full norm_adj)
    n = user_num + item_num
    norm_adj = jnp.zeros((n, n), jnp.float32)
    norm_adj = norm_adj.at[:user_num, user_num:].set(r_norm)
    norm_adj = norm_adj.at[user_num:, :user_num].set(r_norm.T)
    ego = jnp.concatenate([user_emb, item_emb], axis=0)
    layers = [ego]
    for _ in range(n_layers):
        layers.append(norm_adj @ layers[-1])
    ref = jnp.mean(jnp.stack(layers, axis=1), axis=1)

    # adjacency + MXU operands are bf16 in the kernel -> loosened tolerance
    assert jnp.allclose(u_out, ref[:user_num], atol=1e-2, rtol=1e-2)
    assert jnp.allclose(i_out, ref[user_num:], atol=1e-2, rtol=1e-2)

    print("KERNEL_OK")
</pallas_src>

<mosaic_0001>
module attributes {stable_mosaic.version = 11 : i64} {
  func.func @_lgcn_kernel(%arg0: i32, %arg1: i32, %arg2: i32, %arg3: memref<512x512xbf16, #tpu.memory_space<vmem>>, %arg4: memref<32x512xf32, #tpu.memory_space<any>>, %arg5: memref<32x512xf32, #tpu.memory_space<any>>, %arg6: memref<32x512xf32, #tpu.memory_space<vmem>>, %arg7: memref<32x512xf32, #tpu.memory_space<vmem>>, %arg8: memref<32x512xbf16, #tpu.memory_space<vmem>>, %arg9: memref<32x512xbf16, #tpu.memory_space<vmem>>, %arg10: memref<32x512xf32, #tpu.memory_space<vmem>>, %arg11: memref<32x512xf32, #tpu.memory_space<vmem>>, %arg12: memref<2x!tpu.dma_semaphore, #tpu.memory_space<semaphore_mem>>) attributes {dimension_semantics = [#tpu.dimension_semantics<arbitrary>, #tpu.dimension_semantics<arbitrary>, #tpu.dimension_semantics<arbitrary>], iteration_bounds = array<i64: 2, 1, 1>, scalar_prefetch = 0 : i64, scratch_operands = 5 : i64, tpu.core_type = #tpu.core_type<tc>, window_params = [{transform_indices = @transform_0, window_bounds = array<i64: 512, 512>}, {}, {}, {pipeline_mode = #tpu.pipeline_mode<synchronous>, transform_indices = @transform_3, window_bounds = array<i64: 32, 512>}, {pipeline_mode = #tpu.pipeline_mode<synchronous>, transform_indices = @transform_4, window_bounds = array<i64: 32, 512>}]} {
    %c0_i32 = arith.constant 0 : i32
    %0 = arith.cmpi eq, %arg0, %c0_i32 : i32
    %c0_i32_0 = arith.constant 0 : i32
    %1 = arith.cmpi eq, %arg1, %c0_i32_0 : i32
    %c0_i32_1 = arith.constant 0 : i32
    %2 = arith.cmpi eq, %arg2, %c0_i32_1 : i32
    %3 = arith.andi %1, %2 : i1
    %4 = arith.andi %0, %3 : i1
    %5 = arith.extui %4 : i1 to i32
    %c0_i32_2 = arith.constant 0 : i32
    %6 = arith.cmpi ne, %5, %c0_i32_2 : i32
    scf.if %6 {
      %c0_i32_23 = arith.constant 0 : i32
      %43 = tpu.memref_slice %arg12[%c0_i32_23] : memref<2x!tpu.dma_semaphore, #tpu.memory_space<semaphore_mem>> -> memref<1x!tpu.dma_semaphore, #tpu.memory_space<semaphore_mem>>
      %44 = tpu.memref_squeeze %43 : memref<1x!tpu.dma_semaphore, #tpu.memory_space<semaphore_mem>> -> memref<!tpu.dma_semaphore, #tpu.memory_space<semaphore_mem>>
      tpu.enqueue_dma source(%arg4 : memref<32x512xf32, #tpu.memory_space<any>>) target(%arg6 : memref<32x512xf32, #tpu.memory_space<vmem>>) target_semaphore(%44 : memref<!tpu.dma_semaphore, #tpu.memory_space<semaphore_mem>>)
      %c1_i32_24 = arith.constant 1 : i32
      %45 = tpu.memref_slice %arg12[%c1_i32_24] : memref<2x!tpu.dma_semaphore, #tpu.memory_space<semaphore_mem>> -> memref<1x!tpu.dma_semaphore, #tpu.memory_space<semaphore_mem>>
      %46 = tpu.memref_squeeze %45 : memref<1x!tpu.dma_semaphore, #tpu.memory_space<semaphore_mem>> -> memref<!tpu.dma_semaphore, #tpu.memory_space<semaphore_mem>>
      tpu.enqueue_dma source(%arg5 : memref<32x512xf32, #tpu.memory_space<any>>) target(%arg7 : memref<32x512xf32, #tpu.memory_space<vmem>>) target_semaphore(%46 : memref<!tpu.dma_semaphore, #tpu.memory_space<semaphore_mem>>)
      %c0_i32_25 = arith.constant 0 : i32
      %47 = tpu.memref_slice %arg12[%c0_i32_25] : memref<2x!tpu.dma_semaphore, #tpu.memory_space<semaphore_mem>> -> memref<1x!tpu.dma_semaphore, #tpu.memory_space<semaphore_mem>>
      %48 = tpu.memref_squeeze %47 : memref<1x!tpu.dma_semaphore, #tpu.memory_space<semaphore_mem>> -> memref<!tpu.dma_semaphore, #tpu.memory_space<semaphore_mem>>
      tpu.wait_dma2 semaphore(%48 : memref<!tpu.dma_semaphore, #tpu.memory_space<semaphore_mem>>) src(%arg4 : memref<32x512xf32, #tpu.memory_space<any>>) dst(%arg6 : memref<32x512xf32, #tpu.memory_space<vmem>>)
      %c1_i32_26 = arith.constant 1 : i32
      %49 = tpu.memref_slice %arg12[%c1_i32_26] : memref<2x!tpu.dma_semaphore, #tpu.memory_space<semaphore_mem>> -> memref<1x!tpu.dma_semaphore, #tpu.memory_space<semaphore_mem>>
      %50 = tpu.memref_squeeze %49 : memref<1x!tpu.dma_semaphore, #tpu.memory_space<semaphore_mem>> -> memref<!tpu.dma_semaphore, #tpu.memory_space<semaphore_mem>>
      tpu.wait_dma2 semaphore(%50 : memref<!tpu.dma_semaphore, #tpu.memory_space<semaphore_mem>>) src(%arg5 : memref<32x512xf32, #tpu.memory_space<any>>) dst(%arg7 : memref<32x512xf32, #tpu.memory_space<vmem>>)
      %c0_27 = arith.constant 0 : index
      %c0_28 = arith.constant 0 : index
      %51 = vector.load %arg6[%c0_27, %c0_28] : memref<32x512xf32, #tpu.memory_space<vmem>>, vector<32x512xf32>
      %52 = arith.truncf %51 : vector<32x512xf32> to vector<32x512xbf16>
      %c0_29 = arith.constant 0 : index
      %c0_30 = arith.constant 0 : index
      %53 = vector.load %arg8[%c0_29, %c0_30] : memref<32x512xbf16, #tpu.memory_space<vmem>>, vector<32x512xbf16>
      tpu.vector_store %arg8[%c0_29, %c0_30], %52 {strides = array<i32>} : memref<32x512xbf16, #tpu.memory_space<vmem>>, vector<32x512xbf16>,
      %c0_31 = arith.constant 0 : index
      %c0_32 = arith.constant 0 : index
      %54 = vector.load %arg7[%c0_31, %c0_32] : memref<32x512xf32, #tpu.memory_space<vmem>>, vector<32x512xf32>
      %55 = arith.truncf %54 : vector<32x512xf32> to vector<32x512xbf16>
      %c0_33 = arith.constant 0 : index
      %c0_34 = arith.constant 0 : index
      %56 = vector.load %arg9[%c0_33, %c0_34] : memref<32x512xbf16, #tpu.memory_space<vmem>>, vector<32x512xbf16>
      tpu.vector_store %arg9[%c0_33, %c0_34], %55 {strides = array<i32>} : memref<32x512xbf16, #tpu.memory_space<vmem>>, vector<32x512xbf16>,
    } else {
    }
    %c512_i32 = arith.constant 512 : i32
    %7 = arith.muli %arg1, %c512_i32 : i32
    %8 = tpu.assume_multiple %7, 512 : i32
    %c512_i32_3 = arith.constant 512 : i32
    %9 = arith.muli %arg2, %c512_i32_3 : i32
    %10 = tpu.assume_multiple %9, 512 : i32
    %c0 = arith.constant 0 : index
    %c0_4 = arith.constant 0 : index
    %11 = vector.load %arg3[%c0, %c0_4] : memref<512x512xbf16, #tpu.memory_space<vmem>>, vector<512x512xbf16>
    %c0_5 = arith.constant 0 : index
    %12 = arith.index_cast %8 : i32 to index
    %13 = vector.load %arg8[%c0_5, %12] : memref<32x512xbf16, #tpu.memory_space<vmem>>, vector<32x512xbf16>
    %c0_6 = arith.constant 0 : index
    %14 = arith.index_cast %10 : i32 to index
    %15 = vector.load %arg9[%c0_6, %14] : memref<32x512xbf16, #tpu.memory_space<vmem>>, vector<32x512xbf16>
    %cst = arith.constant dense<0.000000e+00> : vector<32x512xf32>
    %16 = tpu.matmul %15, %11, %cst {dimension_numbers = #tpu.dot_dimension_numbers<[1], [1], [0], [0], [0, 0, 1, 0], [], []>} : vector<32x512xbf16>, vector<512x512xbf16>, vector<32x512xf32> -> vector<32x512xf32>
    %cst_7 = arith.constant dense<0.000000e+00> : vector<32x512xf32>
    %17 = tpu.matmul %13, %11, %cst_7 {dimension_numbers = #tpu.dot_dimension_numbers<[1], [0], [0], [1], [0, 0, 1, 1], [], []>} : vector<32x512xbf16>, vector<512x512xbf16>, vector<32x512xf32> -> vector<32x512xf32>
    %c0_i32_8 = arith.constant 0 : i32
    %18 = arith.cmpi eq, %arg2, %c0_i32_8 : i32
    %19 = arith.extui %18 : i1 to i32
    %c0_i32_9 = arith.constant 0 : i32
    %20 = arith.cmpi ne, %19, %c0_i32_9 : i32
    scf.if %20 {
      %c0_23 = arith.constant 0 : index
      %c0_24 = arith.constant 0 : index
      %43 = vector.load %arg11[%c0_23, %c0_24] : memref<32x512xf32, #tpu.memory_space<vmem>>, vector<32x512xf32>
      tpu.vector_store %arg11[%c0_23, %c0_24], %16 {strides = array<i32>} : memref<32x512xf32, #tpu.memory_space<vmem>>, vector<32x512xf32>,
    } else {
    }
    %c0_i32_10 = arith.constant 0 : i32
    %21 = arith.cmpi sgt, %arg2, %c0_i32_10 : i32
    %22 = arith.extui %21 : i1 to i32
    %c0_i32_11 = arith.constant 0 : i32
    %23 = arith.cmpi ne, %22, %c0_i32_11 : i32
    scf.if %23 {
      %c0_23 = arith.constant 0 : index
      %c0_24 = arith.constant 0 : index
      %43 = vector.load %arg11[%c0_23, %c0_24] : memref<32x512xf32, #tpu.memory_space<vmem>>, vector<32x512xf32>
      %44 = arith.addf %43, %16 : vector<32x512xf32>
      %c0_25 = arith.constant 0 : index
      %c0_26 = arith.constant 0 : index
      %45 = vector.load %arg11[%c0_25, %c0_26] : memref<32x512xf32, #tpu.memory_space<vmem>>, vector<32x512xf32>
      tpu.vector_store %arg11[%c0_25, %c0_26], %44 {strides = array<i32>} : memref<32x512xf32, #tpu.memory_space<vmem>>, vector<32x512xf32>,
    } else {
    }
    %c0_i32_12 = arith.constant 0 : i32
    %24 = arith.cmpi eq, %arg1, %c0_i32_12 : i32
    %25 = arith.extui %24 : i1 to i32
    %c0_i32_13 = arith.constant 0 : i32
    %26 = arith.cmpi ne, %25, %c0_i32_13 : i32
    scf.if %26 {
      %c0_23 = arith.constant 0 : index
      %43 = arith.index_cast %10 : i32 to index
      %44 = vector.load %arg10[%c0_23, %43] : memref<32x512xf32, #tpu.memory_space<vmem>>, vector<32x512xf32>
      tpu.vector_store %arg10[%c0_23, %43], %17 {strides = array<i32>} : memref<32x512xf32, #tpu.memory_space<vmem>>, vector<32x512xf32>,
    } else {
    }
    %c0_i32_14 = arith.constant 0 : i32
    %27 = arith.cmpi sgt, %arg1, %c0_i32_14 : i32
    %28 = arith.extui %27 : i1 to i32
    %c0_i32_15 = arith.constant 0 : i32
    %29 = arith.cmpi ne, %28, %c0_i32_15 : i32
    scf.if %29 {
      %c0_23 = arith.constant 0 : index
      %43 = arith.index_cast %10 : i32 to index
      %44 = vector.load %arg10[%c0_23, %43] : memref<32x512xf32, #tpu.memory_space<vmem>>, vector<32x512xf32>
      %45 = arith.addf %44, %17 : vector<32x512xf32>
      %c0_24 = arith.constant 0 : index
      %46 = arith.index_cast %10 : i32 to index
      %47 = vector.load %arg10[%c0_24, %46] : memref<32x512xf32, #tpu.memory_space<vmem>>, vector<32x512xf32>
      tpu.vector_store %arg10[%c0_24, %46], %45 {strides = array<i32>} : memref<32x512xf32, #tpu.memory_space<vmem>>, vector<32x512xf32>,
    } else {
    }
    %c0_i32_16 = arith.constant 0 : i32
    %30 = arith.cmpi eq, %arg2, %c0_i32_16 : i32
    %31 = arith.extui %30 : i1 to i32
    %c0_i32_17 = arith.constant 0 : i32
    %32 = arith.cmpi ne, %31, %c0_i32_17 : i32
    scf.if %32 {
      %c0_23 = arith.constant 0 : index
      %c0_24 = arith.constant 0 : index
      %43 = vector.load %arg11[%c0_23, %c0_24] : memref<32x512xf32, #tpu.memory_space<vmem>>, vector<32x512xf32>
      %c0_25 = arith.constant 0 : index
      %44 = arith.index_cast %8 : i32 to index
      %45 = vector.load %arg6[%c0_25, %44] : memref<32x512xf32, #tpu.memory_space<vmem>>, vector<32x512xf32>
      %46 = arith.addf %45, %43 : vector<32x512xf32>
      %c0_26 = arith.constant 0 : index
      %47 = arith.index_cast %8 : i32 to index
      %48 = vector.load %arg6[%c0_26, %47] : memref<32x512xf32, #tpu.memory_space<vmem>>, vector<32x512xf32>
      tpu.vector_store %arg6[%c0_26, %47], %46 {strides = array<i32>} : memref<32x512xf32, #tpu.memory_space<vmem>>, vector<32x512xf32>,
      %49 = arith.truncf %43 : vector<32x512xf32> to vector<32x512xbf16>
      %c0_27 = arith.constant 0 : index
      %50 = arith.index_cast %8 : i32 to index
      %51 = vector.load %arg8[%c0_27, %50] : memref<32x512xbf16, #tpu.memory_space<vmem>>, vector<32x512xbf16>
      tpu.vector_store %arg8[%c0_27, %50], %49 {strides = array<i32>} : memref<32x512xbf16, #tpu.memory_space<vmem>>, vector<32x512xbf16>,
    } else {
    }
    %c0_i32_18 = arith.constant 0 : i32
    %33 = arith.cmpi eq, %arg1, %c0_i32_18 : i32
    %34 = arith.extui %33 : i1 to i32
    %c0_i32_19 = arith.constant 0 : i32
    %35 = arith.cmpi ne, %34, %c0_i32_19 : i32
    scf.if %35 {
      %c0_23 = arith.constant 0 : index
      %43 = arith.index_cast %10 : i32 to index
      %44 = vector.load %arg10[%c0_23, %43] : memref<32x512xf32, #tpu.memory_space<vmem>>, vector<32x512xf32>
      %c0_24 = arith.constant 0 : index
      %45 = arith.index_cast %10 : i32 to index
      %46 = vector.load %arg7[%c0_24, %45] : memref<32x512xf32, #tpu.memory_space<vmem>>, vector<32x512xf32>
      %47 = arith.addf %46, %44 : vector<32x512xf32>
      %c0_25 = arith.constant 0 : index
      %48 = arith.index_cast %10 : i32 to index
      %49 = vector.load %arg7[%c0_25, %48] : memref<32x512xf32, #tpu.memory_space<vmem>>, vector<32x512xf32>
      tpu.vector_store %arg7[%c0_25, %48], %47 {strides = array<i32>} : memref<32x512xf32, #tpu.memory_space<vmem>>, vector<32x512xf32>,
      %50 = arith.truncf %44 : vector<32x512xf32> to vector<32x512xbf16>
      %c0_26 = arith.constant 0 : index
      %51 = arith.index_cast %10 : i32 to index
      %52 = vector.load %arg9[%c0_26, %51] : memref<32x512xbf16, #tpu.memory_space<vmem>>, vector<32x512xbf16>
      tpu.vector_store %arg9[%c0_26, %51], %50 {strides = array<i32>} : memref<32x512xbf16, #tpu.memory_space<vmem>>, vector<32x512xbf16>,
    } else {
    }
    %c1_i32 = arith.constant 1 : i32
    %36 = arith.cmpi eq, %arg0, %c1_i32 : i32
    %c0_i32_20 = arith.constant 0 : i32
    %37 = arith.cmpi eq, %arg1, %c0_i32_20 : i32
    %c0_i32_21 = arith.constant 0 : i32
    %38 = arith.cmpi eq, %arg2, %c0_i32_21 : i32
    %39 = arith.andi %37, %38 : i1
    %40 = arith.andi %36, %39 : i1
    %41 = arith.extui %40 : i1 to i32
    %c0_i32_22 = arith.constant 0 : i32
    %42 = arith.cmpi ne, %41, %c0_i32_22 : i32
    scf.if %42 {
      %c0_23 = arith.constant 0 : index
      %c0_24 = arith.constant 0 : index
      %43 = vector.load %arg6[%c0_23, %c0_24] : memref<32x512xf32, #tpu.memory_space<vmem>>, vector<32x512xf32>
      %cst_25 = arith.constant 0.333333343 : f32
      %44 = vector.broadcast %cst_25 : f32 to vector<32x512xf32>
      %45 = arith.mulf %43, %44 : vector<32x512xf32>
      %c0_26 = arith.constant 0 : index
      %c0_27 = arith.constant 0 : index
      %46 = vector.load %arg6[%c0_26, %c0_27] : memref<32x512xf32, #tpu.memory_space<vmem>>, vector<32x512xf32>
      tpu.vector_store %arg6[%c0_26, %c0_27], %45 {strides = array<i32>} : memref<32x512xf32, #tpu.memory_space<vmem>>, vector<32x512xf32>,
      %c0_28 = arith.constant 0 : index
      %c0_29 = arith.constant 0 : index
      %47 = vector.load %arg7[%c0_28, %c0_29] : memref<32x512xf32, #tpu.memory_space<vmem>>, vector<32x512xf32>
      %cst_30 = arith.constant 0.333333343 : f32
      %48 = vector.broadcast %cst_30 : f32 to vector<32x512xf32>
      %49 = arith.mulf %47, %48 : vector<32x512xf32>
      %c0_31 = arith.constant 0 : index
      %c0_32 = arith.constant 0 : index
      %50 = vector.load %arg7[%c0_31, %c0_32] : memref<32x512xf32, #tpu.memory_space<vmem>>, vector<32x512xf32>
      tpu.vector_store %arg7[%c0_31, %c0_32], %49 {strides = array<i32>} : memref<32x512xf32, #tpu.memory_space<vmem>>, vector<32x512xf32>,
    } else {
    }
    return
  }
  func.func @transform_0(%arg0: i32, %arg1: i32, %arg2: i32) -> (i32, i32) {
    %c0_i32 = arith.constant 0 : i32
    return %arg1, %arg2 : i32, i32
  }
  func.func @transform_3(%arg0: i32, %arg1: i32, %arg2: i32) -> (i32, i32) {
    %c0_i32 = arith.constant 0 : i32
    %c0_i32_0 = arith.constant 0 : i32
    %c0_i32_1 = arith.constant 0 : i32
    return %c0_i32, %c0_i32_0 : i32, i32
  }
  func.func @transform_4(%arg0: i32, %arg1: i32, %arg2: i32) -> (i32, i32) {
    %c0_i32 = arith.constant 0 : i32
    %c0_i32_0 = arith.constant 0 : i32
    %c0_i32_1 = arith.constant 0 : i32
    return %c0_i32, %c0_i32_0 : i32, i32
  }
}

</mosaic_0001>

<llo_original>
// kernel: tpu_custom_call.1
$region0: #{tpu_custom_call.1}
  #allocation0 [shape = 'u32[]', space=smem, size = 0x4, offset = 0x4, fixed_abs, tag = 'smem constant byte address 0x4 - core index']
  #allocation1 [shape = 'u32[72,128]{1,0:T(1,128)}', space=vmem, size = 0x9000, scoped, tag = 'internal scratch']
  #allocation2 [shape = 'bf16[32,512]{1,0:T(8,128)(2,1)}', space=vmem, size = 0x8000, scoped, tag = 'scratch operand']
  #allocation3 [shape = 'bf16[32,512]{1,0:T(8,128)(2,1)}', space=vmem, size = 0x8000, scoped, tag = 'scratch operand']
  #allocation4 [shape = 'f32[32,512]{1,0:T(8,128)}', space=vmem, size = 0x10000, scoped, tag = 'scratch operand']
  #allocation5 [shape = 'f32[32,512]{1,0:T(8,128)}', space=vmem, size = 0x10000, scoped, tag = 'scratch operand']
  #allocation6 [shape = 's32[2]{0}', space=sflag, size = 0x8, scoped, tag = 'scratch operand']
  #allocation13 [shape = 's32[]', space=sflag, size = 0x4, offset = 0, fixed_abs, tag = 'sflag constant byte address 0x0 - dummy sync flag']
  #allocation14 [shape = 's32[]', space=sflag, size = 0x4, offset = 0, fixed_abs, tag = 'sflag constant byte address 0x0 - dummy sync flag']
  #allocation15 [shape = 'u32[]', space=smem, size = 0x4, offset = 0x44, fixed_abs, tag = 'smem constant byte address 0x44 - assertion arg 0']
  #allocation16 [shape = 'u32[]', space=smem, size = 0x4, offset = 0x48, fixed_abs, tag = 'smem constant byte address 0x48 - assertion arg 1']
  #allocation17 [shape = 's32[]', space=sflag, size = 0x4, offset = 0, fixed_abs, tag = 'sflag constant byte address 0x0 - dummy sync flag']
  #allocation18 [shape = 's32[]', space=sflag, size = 0x4, offset = 0, fixed_abs, tag = 'sflag constant byte address 0x0 - dummy sync flag']
  %s0 = inlined_call_operand.hbm [shape: bf16[512,512], index: 0, kind: input, shape index: {}]
  %s1 = inlined_call_operand.hbm [shape: f32[32,512], index: 1, kind: input, shape index: {}]
  %s2 = inlined_call_operand.hbm [shape: f32[32,512], index: 2, kind: input, shape index: {}]
  %s3 = inlined_call_operand.hbm [shape: f32[32,512], index: 3, kind: output, shape index: {0}]
  %s4 = inlined_call_operand.hbm [shape: f32[32,512], index: 4, kind: output, shape index: {1}]
  %5 = xla_tuple %s3, %s4
  %s6 = sld [smem:[#allocation0]]
  $region89: #{tpu_custom_call.1} parent=0
    _
  %s8 = ssub.s32 1, %s6
  %s9 = scalar_select 0, %s8, %s6
  $region1: #{tpu_custom_call.1} parent=0
    #allocation7 [shape = 'u8[524288]{0}', space=vmem, size = 0x80000, scoped, tag = 'input window, operand 0, single buffered']
    #allocation8 [shape = 's32[2]{0}', space=sflag, size = 0x8, scoped, tag = 'scoped memory for tpu_custom_call.1']
    #allocation9 [shape = 's32[2]{0}', space=sflag, size = 0x8, scoped, tag = 'scoped memory for tpu_custom_call.1']
    #allocation10 [shape = 'u8[65536]{0}', space=vmem, size = 0x10000, scoped, tag = 'output window, operand 0, single buffered']
    #allocation11 [shape = 'u8[65536]{0}', space=vmem, size = 0x10000, scoped, tag = 'output window, operand 1, single buffered']
    #allocation12 [shape = 's32[1]{0}', space=sflag, size = 0x4, scoped, tag = 'scoped memory for tpu_custom_call.1']
    %10 = vsyncpa [#allocation8], 0
    %11 = vsyncpa [#allocation9], 0
    %12 = vsyncpa [#allocation12], 0
    loop: start=0, step=1, limit=4
    $region2: #{tpu_custom_call.1} parent=1 // loop_pre_header
      _
    $region3: #{tpu_custom_call.1} parent=1 // loop_header
      %s14 = sphi 0, %s18
      %p15 = scmp.ge.s32.totalorder %s14, 4
      %s21 = sphi 0, %s40
      %s22 = sphi 0, %s36
      %s23 = sphi 0, %s32
      %s24 = sphi 0, %s21
      %s25 = sphi 0, %s22
      %s26 = sphi 0, %s23
      %s27 = sphi 0, %s24
      %s28 = sphi 0, %s25
      %s29 = sphi 0, %s26
      %s45 = sphi 0, %s47
      %s48 = sphi 0, %s45
      %s49 = sphi 0, %s48
      %s65 = sphi 0, %s49
      %s69 = sphi 0, %s69
      %s71 = sphi 0, %s69
      %s72 = sphi 0, %s71
      %s86 = sphi 0, %s72
      %s90 = sphi 0, %s90
      %s92 = sphi 0, %s90
      %s93 = sphi 0, %s92
      %s107 = sphi 0, %s93
    $region4: #{tpu_custom_call.1} parent=1 // loop_header_branch
      %17 = sbr.rel (%p15) target = $region8
    $region5: #{tpu_custom_call.1} parent=1 // loop_body
      %s19 = ssub.s32 %s14, 1
      %s20 = ssub.s32 %s14, 2
      %s30 = sadd.s32 1, %s23
      %p31 = scmp.ge.s32.totalorder %s30, 1
      %s32 = scalar_select %p31, 0, %s30
      %s33 = sadd.s32 1, %s22
      %s34 = scalar_select %p31, %s33, %s22
      %p35 = scmp.ge.s32.totalorder %s34, 1
      %s36 = scalar_select %p35, 0, %s34
      %s37 = sadd.s32 1, %s21
      %s38 = scalar_select %p35, %s37, %s21
      %p39 = scmp.ge.s32.totalorder %s38, 2
      %s40 = scalar_select %p39, 0, %s38
      %s41 = ssub.s32 %s22, %s36
      %s42 = ssub.s32 %s23, %s32
      %s43 = sor.u32 %s41, %s42
      %p44 = scmp.eq.s32.totalorder %s43, 0
      %s46 = sadd.s32 %s45, 1
      %s47 = scalar_select %p44, %s45, %s46
      %p50 = pneg %p44
      %p51 = scmp.eq.s32.totalorder %s14, 1
      %p52 = por %p50, %p51
      %p53 = scmp.ne.s32.totalorder %s45, %s48
      %p54 = scmp.eq.s32.totalorder %s14, 0
      %p55 = por %p53, %p54
      %p56 = scmp.ne.s32.totalorder %s45, %s48
      %p57 = scmp.eq.s32.totalorder %s19, 1
      %p58 = por %p56, %p57
      %p59 = scmp.ne.s32.totalorder %s48, %s49
      %p60 = scmp.eq.s32.totalorder %s19, 0
      %p61 = por %p59, %p60
      %p62 = scmp.ne.s32.totalorder %s48, %s49
      %p63 = scmp.eq.s32.totalorder %s20, 1
      %p64 = por %p62, %p63
      %p66 = scmp.ne.s32.totalorder %s49, %s65
      %p67 = scmp.eq.s32.totalorder %s20, 0
      %p68 = por %p66, %p67
      %s70 = sadd.s32 %s69, 1
      %p73 = scmp.eq.s32.totalorder %s14, 1
      %p74 = scmp.ne.s32.totalorder %s69, %s71
      %p75 = scmp.eq.s32.totalorder %s14, 0
      %p76 = por %p74, %p75
      %p77 = scmp.ne.s32.totalorder %s69, %s71
      %p78 = scmp.eq.s32.totalorder %s19, 1
      %p79 = por %p77, %p78
      %p80 = scmp.ne.s32.totalorder %s71, %s72
      %p81 = scmp.eq.s32.totalorder %s19, 0
      %p82 = por %p80, %p81
      %p83 = scmp.ne.s32.totalorder %s71, %s72
      %p84 = scmp.eq.s32.totalorder %s20, 1
      %p85 = por %p83, %p84
      %p87 = scmp.ne.s32.totalorder %s72, %s86
      %p88 = scmp.eq.s32.totalorder %s20, 0
      %p89 = por %p87, %p88
      %s91 = sadd.s32 %s90, 1
      %p94 = scmp.eq.s32.totalorder %s14, 1
      %p95 = scmp.ne.s32.totalorder %s90, %s92
      %p96 = scmp.eq.s32.totalorder %s14, 0
      %p97 = por %p95, %p96
      %p98 = scmp.ne.s32.totalorder %s90, %s92
      %p99 = scmp.eq.s32.totalorder %s19, 1
      %p100 = por %p98, %p99
      %p101 = scmp.ne.s32.totalorder %s92, %s93
      %p102 = scmp.eq.s32.totalorder %s19, 0
      %p103 = por %p101, %p102
      %p104 = scmp.ne.s32.totalorder %s92, %s93
      %p105 = scmp.eq.s32.totalorder %s20, 1
      %p106 = por %p104, %p105
      %p108 = scmp.ne.s32.totalorder %s93, %s107
      %p109 = scmp.eq.s32.totalorder %s20, 0
      %p110 = por %p108, %p109
      %p111 = scmp.le.s32.totalorder 1, %s14
      %p112 = scmp.lt.s32.totalorder %s14, 3
      %p113 = pnand %p111, %p112
      %p114 = pneg %p113
      // Predicated region
      $region9: #{tpu_custom_call.1} parent=5 // pred_check
        _
      $region10: #{tpu_custom_call.1} parent=5 // pred_check_branch
        %116 = sbr.rel (%p113) target = $region12
      $region11: #{tpu_custom_call.1} parent=5 // pred_region
        %s117 = ssub.s32 %s14, 1
        // Predicated region
        $region13: #{tpu_custom_call.1} parent=11 // pred_check
          %p118 = pneg %p61
        $region14: #{tpu_custom_call.1} parent=11 // pred_check_branch
          %120 = sbr.rel (%p118) target = $region16
        $region15: #{tpu_custom_call.1} parent=11 // pred_region
          %s121 = smul.u32 64, %s25
          %s122 = smul.u32 4, %s26
          %124 = vsyncadd [#allocation8], 0
          %s125 = smul.addr %s121, 4
          %s126 = sadd.s32 %s122, %s125
          %s127 = smul.addr %s126, 4
          %s128 = scalar_lea.hbm %s0, %s127
          %s129 = sshll.u32 %s128, 4
          %s130 = int_to_ptr.hbm [resolvable:$true] %s129
          %s131 = sshll.u32 [#allocation7], 4
          %s132 = int_to_ptr.vmem [resolvable:$true] %s131
          %137 = dma.hbm_to_vmem [thread:$0]  %s130, 16384, %s132, [#allocation8], 256, 256, 16
        $region16: #{tpu_custom_call.1} parent=11 // pred_fallthru
          _
      $region12: #{tpu_custom_call.1} parent=5 // pred_fallthru
        _
      %p138 = scmp.lt.s32.totalorder %s14, 2
      // Predicated region
      $region17: #{tpu_custom_call.1} parent=5 // pred_check
        %p139 = pneg %p138
      $region18: #{tpu_custom_call.1} parent=5 // pred_check_branch
        %141 = sbr.rel (%p139) target = $region20
      $region19: #{tpu_custom_call.1} parent=5 // pred_region
        _
      $region20: #{tpu_custom_call.1} parent=5 // pred_fallthru
        _
      %p142 = scmp.le.s32.totalorder 1, %s14
      %p143 = scmp.lt.s32.totalorder %s14, 3
      %p144 = pnand %p142, %p143
      %p145 = pneg %p144
      // Predicated region
      $region21: #{tpu_custom_call.1} parent=5 // pred_check
        _
      $region22: #{tpu_custom_call.1} parent=5 // pred_check_branch
        %147 = sbr.rel (%p144) target = $region24
      $region23: #{tpu_custom_call.1} parent=5 // pred_region
        %s148 = ssub.s32 %s14, 1
        // Predicated region
        $region25: #{tpu_custom_call.1} parent=23 // pred_check
          %p149 = pneg %p61
        $region26: #{tpu_custom_call.1} parent=23 // pred_check_branch
          %151 = sbr.rel (%p149) target = $region28
        $region27: #{tpu_custom_call.1} parent=23 // pred_region
          %153 = dma.done [#allocation8], 16384
        $region28: #{tpu_custom_call.1} parent=23 // pred_fallthru
          _
        %p154 = pneg %p61
        %p155 = pneg %p58
        %p156 = pneg %p82
        %p157 = pneg %p79
        %p158 = pneg %p103
        %p159 = pneg %p100
        %s160 = smul.u32 64, %s25
        %s161 = smul.u32 4, %s26
        %p162 = scmp.eq.s32.totalorder %s24, 0
        %p163 = scmp.eq.s32.totalorder %s25, 0
        %p164 = scmp.eq.s32.totalorder %s26, 0
        %p165 = pnand %p163, %p164
        %p166 = pneg %p165
        %p167 = pnand %p162, %p166
        %p168 = pneg %p167
        // Predicated region
        $region29: #{tpu_custom_call.1} parent=23 // pred_check
          _
        $region30: #{tpu_custom_call.1} parent=23 // pred_check_branch
          %170 = sbr.rel (%p167) target = $region32
        $region31: #{tpu_custom_call.1} parent=23 // pred_region
          // Predicated region
          $region33: #{tpu_custom_call.1} parent=31 // pred_check
            _
          $region34: #{tpu_custom_call.1} parent=31 // pred_check_branch
            %172 = sbr.rel target = $region36
          $region35: #{tpu_custom_call.1} parent=31 // pred_region
            %173 = sst [smem:[#allocation15]] [#allocation14]
            %174 = sst [smem:[#allocation16]] [#allocation13]
          $region36: #{tpu_custom_call.1} parent=31 // pred_fallthru
            _
          %176 = shalt.err (0)
          %s178 = sshll.u32 %s1, 4
          %s179 = int_to_ptr.hbm [resolvable:$true] %s178
          %s180 = sshll.u32 [#allocation10], 4
          %s181 = int_to_ptr.vmem [resolvable:$true] %s180
          %183 = dma.hbm_to_vmem [thread:$0]  %s179, 2048, %s181, [#allocation6]
          %s184 = scalar_lea.sflag [#allocation6], 1
          // Predicated region
          $region37: #{tpu_custom_call.1} parent=31 // pred_check
            _
          $region38: #{tpu_custom_call.1} parent=31 // pred_check_branch
            %186 = sbr.rel target = $region40
          $region39: #{tpu_custom_call.1} parent=31 // pred_region
            %187 = sst [smem:[#allocation15]] [#allocation18]
            %188 = sst [smem:[#allocation16]] [#allocation17]
          $region40: #{tpu_custom_call.1} parent=31 // pred_fallthru
            _
          %190 = shalt.err (0)
          %s192 = sshll.u32 %s2, 4
          %s193 = int_to_ptr.hbm [resolvable:$true] %s192
          %s194 = sshll.u32 [#allocation11], 4
          %s195 = int_to_ptr.vmem [resolvable:$true] %s194
          %197 = dma.hbm_to_vmem [thread:$0]  %s193, 2048, %s195, %s184
          %s198 = smul.u32 8, 4
          %s199 = smul.u32 %s198, 4
          %s200 = sshll.u32 %s199, 4
          %201 = dma.done [#allocation6], %s200
          %s202 = sshll.u32 %s199, 4
          %203 = dma.done %s184, %s202
          %v204 = vld [vmem:[#allocation10] sm:$0xff]
          %v205 = vld [vmem:[#allocation10 + $0x8] sm:$0xff]
          %v206 = vld [vmem:[#allocation10 + $0x10] sm:$0xff]
          %v207 = vld [vmem:[#allocation10 + $0x18] sm:$0xff]
          %v208 = vld [vmem:[#allocation10 + $0x20] sm:$0xff]
          %v209 = vld [vmem:[#allocation10 + $0x28] sm:$0xff]
          %v210 = vld [vmem:[#allocation10 + $0x30] sm:$0xff]
          %v211 = vld [vmem:[#allocation10 + $0x38] sm:$0xff]
          %v212 = vld [vmem:[#allocation10 + $0x40] sm:$0xff]
          %v213 = vld [vmem:[#allocation10 + $0x48] sm:$0xff]
          %v214 = vld [vmem:[#allocation10 + $0x50] sm:$0xff]
          %v215 = vld [vmem:[#allocation10 + $0x58] sm:$0xff]
          %v216 = vld [vmem:[#allocation10 + $0x60] sm:$0xff]
          %v217 = vld [vmem:[#allocation10 + $0x68] sm:$0xff]
          %v218 = vld [vmem:[#allocation10 + $0x70] sm:$0xff]
          %v219 = vld [vmem:[#allocation10 + $0x78] sm:$0xff]
          %v220 = vpack.c.bf16 %v205, %v204
          %v221 = vpack.c.bf16 %v207, %v206
          %v222 = vpack.c.bf16 %v209, %v208
          %v223 = vpack.c.bf16 %v211, %v210
          %v224 = vpack.c.bf16 %v213, %v212
          %v225 = vpack.c.bf16 %v215, %v214
          %v226 = vpack.c.bf16 %v217, %v216
          %v227 = vpack.c.bf16 %v219, %v218
          %228 = vst [vmem:[#allocation2] sm:$0xff] %v220
          %229 = vst [vmem:[#allocation2 + $0x8] sm:$0xff] %v221
          %230 = vst [vmem:[#allocation2 + $0x10] sm:$0xff] %v222
          %231 = vst [vmem:[#allocation2 + $0x18] sm:$0xff] %v223
          %232 = vst [vmem:[#allocation2 + $0x20] sm:$0xff] %v224
          %233 = vst [vmem:[#allocation2 + $0x28] sm:$0xff] %v225
          %234 = vst [vmem:[#allocation2 + $0x30] sm:$0xff] %v226
          %235 = vst [vmem:[#allocation2 + $0x38] sm:$0xff] %v227
          %v236 = vld [vmem:[#allocation11] sm:$0xff]
          %v237 = vld [vmem:[#allocation11 + $0x8] sm:$0xff]
          %v238 = vld [vmem:[#allocation11 + $0x10] sm:$0xff]
          %v239 = vld [vmem:[#allocation11 + $0x18] sm:$0xff]
          %v240 = vld [vmem:[#allocation11 + $0x20] sm:$0xff]
          %v241 = vld [vmem:[#allocation11 + $0x28] sm:$0xff]
          %v242 = vld [vmem:[#allocation11 + $0x30] sm:$0xff]
          %v243 = vld [vmem:[#allocation11 + $0x38] sm:$0xff]
          %v244 = vld [vmem:[#allocation11 + $0x40] sm:$0xff]
          %v245 = vld [vmem:[#allocation11 + $0x48] sm:$0xff]
          %v246 = vld [vmem:[#allocation11 + $0x50] sm:$0xff]
          %v247 = vld [vmem:[#allocation11 + $0x58] sm:$0xff]
          %v248 = vld [vmem:[#allocation11 + $0x60] sm:$0xff]
          %v249 = vld [vmem:[#allocation11 + $0x68] sm:$0xff]
          %v250 = vld [vmem:[#allocation11 + $0x70] sm:$0xff]
          %v251 = vld [vmem:[#allocation11 + $0x78] sm:$0xff]
          %v252 = vpack.c.bf16 %v237, %v236
          %v253 = vpack.c.bf16 %v239, %v238
          %v254 = vpack.c.bf16 %v241, %v240
          %v255 = vpack.c.bf16 %v243, %v242
          %v256 = vpack.c.bf16 %v245, %v244
          %v257 = vpack.c.bf16 %v247, %v246
          %v258 = vpack.c.bf16 %v249, %v248
          %v259 = vpack.c.bf16 %v251, %v250
          %260 = vst [vmem:[#allocation3] sm:$0xff] %v252
          %261 = vst [vmem:[#allocation3 + $0x8] sm:$0xff] %v253
          %262 = vst [vmem:[#allocation3 + $0x10] sm:$0xff] %v254
          %263 = vst [vmem:[#allocation3 + $0x18] sm:$0xff] %v255
          %264 = vst [vmem:[#allocation3 + $0x20] sm:$0xff] %v256
          %265 = vst [vmem:[#allocation3 + $0x28] sm:$0xff] %v257
          %266 = vst [vmem:[#allocation3 + $0x30] sm:$0xff] %v258
          %267 = vst [vmem:[#allocation3 + $0x38] sm:$0xff] %v259
        $region32: #{tpu_custom_call.1} parent=23 // pred_fallthru
          _
        %s268 = smul.u32 %s25, 512
        %s269 = smul.u32 %s26, 512
        %v270 = vld [vmem:[#allocation7] sm:$0xff]
        %v271 = vld [vmem:[#allocation7 + $0x8] sm:$0xff]
        %v272 = vld [vmem:[#allocation7 + $0x10] sm:$0xff]
        %v273 = vld [vmem:[#allocation7 + $0x18] sm:$0xff]
        %v274 = vld [vmem:[#allocation7 + $0x20] sm:$0xff]
        %v275 = vld [vmem:[#allocation7 + $0x28] sm:$0xff]
        %v276 = vld [vmem:[#allocation7 + $0x30] sm:$0xff]
        %v277 = vld [vmem:[#allocation7 + $0x38] sm:$0xff]
        %v278 = vld [vmem:[#allocation7 + $0x40] sm:$0xff]
        %v279 = vld [vmem:[#allocation7 + $0x48] sm:$0xff]
        %v280 = vld [vmem:[#allocation7 + $0x50] sm:$0xff]
        %v281 = vld [vmem:[#allocation7 + $0x58] sm:$0xff]
        %v282 = vld [vmem:[#allocation7 + $0x60] sm:$0xff]
        %v283 = vld [vmem:[#allocation7 + $0x68] sm:$0xff]
        %v284 = vld [vmem:[#allocation7 + $0x70] sm:$0xff]
        %v285 = vld [vmem:[#allocation7 + $0x78] sm:$0xff]
        %v286 = vld [vmem:[#allocation7 + $0x80] sm:$0xff]
        %v287 = vld [vmem:[#allocation7 + $0x88] sm:$0xff]
        %v288 = vld [vmem:[#allocation7 + $0x90] sm:$0xff]
        %v289 = vld [vmem:[#allocation7 + $0x98] sm:$0xff]
        %v290 = vld [vmem:[#allocation7 + $0xa0] sm:$0xff]
        %v291 = vld [vmem:[#allocation7 + $0xa8] sm:$0xff]
        %v292 = vld [vmem:[#allocation7 + $0xb0] sm:$0xff]
        %v293 = vld [vmem:[#allocation7 + $0xb8] sm:$0xff]
        %v294 = vld [vmem:[#allocation7 + $0xc0] sm:$0xff]
        %v295 = vld [vmem:[#allocation7 + $0xc8] sm:$0xff]
        %v296 = vld [vmem:[#allocation7 + $0xd0] sm:$0xff]
        %v297 = vld [vmem:[#allocation7 + $0xd8] sm:$0xff]
        %v298 = vld [vmem:[#allocation7 + $0xe0] sm:$0xff]
        %v299 = vld [vmem:[#allocation7 + $0xe8] sm:$0xff]
        %v300 = vld [vmem:[#allocation7 + $0xf0] sm:$0xff]
        %v301 = vld [vmem:[#allocation7 + $0xf8] sm:$0xff]
        %v302 = vld [vmem:[#allocation7 + $0x100] sm:$0xff]
        %v303 = vld [vmem:[#allocation7 + $0x108] sm:$0xff]
        %v304 = vld [vmem:[#allocation7 + $0x110] sm:$0xff]
        %v305 = vld [vmem:[#allocation7 + $0x118] sm:$0xff]
        %v306 = vld [vmem:[#allocation7 + $0x120] sm:$0xff]
        %v307 = vld [vmem:[#allocation7 + $0x128] sm:$0xff]
        %v308 = vld [vmem:[#allocation7 + $0x130] sm:$0xff]
        %v309 = vld [vmem:[#allocation7 + $0x138] sm:$0xff]
        %v310 = vld [vmem:[#allocation7 + $0x140] sm:$0xff]
        %v311 = vld [vmem:[#allocation7 + $0x148] sm:$0xff]
        %v312 = vld [vmem:[#allocation7 + $0x150] sm:$0xff]
        %v313 = vld [vmem:[#allocation7 + $0x158] sm:$0xff]
        %v314 = vld [vmem:[#allocation7 + $0x160] sm:$0xff]
        %v315 = vld [vmem:[#allocation7 + $0x168] sm:$0xff]
        %v316 = vld [vmem:[#allocation7 + $0x170] sm:$0xff]
        %v317 = vld [vmem:[#allocation7 + $0x178] sm:$0xff]
        %v318 = vld [vmem:[#allocation7 + $0x180] sm:$0xff]
        %v319 = vld [vmem:[#allocation7 + $0x188] sm:$0xff]
        %v320 = vld [vmem:[#allocation7 + $0x190] sm:$0xff]
        %v321 = vld [vmem:[#allocation7 + $0x198] sm:$0xff]
        %v322 = vld [vmem:[#allocation7 + $0x1a0] sm:$0xff]
        %v323 = vld [vmem:[#allocation7 + $0x1a8] sm:$0xff]
        %v324 = vld [vmem:[#allocation7 + $0x1b0] sm:$0xff]
        %v325 = vld [vmem:[#allocation7 + $0x1b8] sm:$0xff]
        %v326 = vld [vmem:[#allocation7 + $0x1c0] sm:$0xff]
        %v327 = vld [vmem:[#allocation7 + $0x1c8] sm:$0xff]
        %v328 = vld [vmem:[#allocation7 + $0x1d0] sm:$0xff]
        %v329 = vld [vmem:[#allocation7 + $0x1d8] sm:$0xff]
        %v330 = vld [vmem:[#allocation7 + $0x1e0] sm:$0xff]
        %v331 = vld [vmem:[#allocation7 + $0x1e8] sm:$0xff]
        %v332 = vld [vmem:[#allocation7 + $0x1f0] sm:$0xff]
        %v333 = vld [vmem:[#allocation7 + $0x1f8] sm:$0xff]
        %v334 = vld [vmem:[#allocation7 + $0x200] sm:$0xff]
        %v335 = vld [vmem:[#allocation7 + $0x208] sm:$0xff]
        %v336 = vld [vmem:[#allocation7 + $0x210] sm:$0xff]
        %v337 = vld [vmem:[#allocation7 + $0x218] sm:$0xff]
        %v338 = vld [vmem:[#allocation7 + $0x220] sm:$0xff]
        %v339 = vld [vmem:[#allocation7 + $0x228] sm:$0xff]
        %v340 = vld [vmem:[#allocation7 + $0x230] sm:$0xff]
        %v341 = vld [vmem:[#allocation7 + $0x238] sm:$0xff]
        %v342 = vld [vmem:[#allocation7 + $0x240] sm:$0xff]
        %v343 = vld [vmem:[#allocation7 + $0x248] sm:$0xff]
        %v344 = vld [vmem:[#allocation7 + $0x250] sm:$0xff]
        %v345 = vld [vmem:[#allocation7 + $0x258] sm:$0xff]
        %v346 = vld [vmem:[#allocation7 + $0x260] sm:$0xff]
        %v347 = vld [vmem:[#allocation7 + $0x268] sm:$0xff]
        %v348 = vld [vmem:[#allocation7 + $0x270] sm:$0xff]
        %v349 = vld [vmem:[#allocation7 + $0x278] sm:$0xff]
        %v350 = vld [vmem:[#allocation7 + $0x280] sm:$0xff]
        %v351 = vld [vmem:[#allocation7 + $0x288] sm:$0xff]
        %v352 = vld [vmem:[#allocation7 + $0x290] sm:$0xff]
        %v353 = vld [vmem:[#allocation7 + $0x298] sm:$0xff]
        %v354 = vld [vmem:[#allocation7 + $0x2a0] sm:$0xff]
        %v355 = vld [vmem:[#allocation7 + $0x2a8] sm:$0xff]
        %v356 = vld [vmem:[#allocation7 + $0x2b0] sm:$0xff]
        %v357 = vld [vmem:[#allocation7 + $0x2b8] sm:$0xff]
        %v358 = vld [vmem:[#allocation7 + $0x2c0] sm:$0xff]
        %v359 = vld [vmem:[#allocation7 + $0x2c8] sm:$0xff]
        %v360 = vld [vmem:[#allocation7 + $0x2d0] sm:$0xff]
        %v361 = vld [vmem:[#allocation7 + $0x2d8] sm:$0xff]
        %v362 = vld [vmem:[#allocation7 + $0x2e0] sm:$0xff]
        %v363 = vld [vmem:[#allocation7 + $0x2e8] sm:$0xff]
        %v364 = vld [vmem:[#allocation7 + $0x2f0] sm:$0xff]
        %v365 = vld [vmem:[#allocation7 + $0x2f8] sm:$0xff]
        %v366 = vld [vmem:[#allocation7 + $0x300] sm:$0xff]
        %v367 = vld [vmem:[#allocation7 + $0x308] sm:$0xff]
        %v368 = vld [vmem:[#allocation7 + $0x310] sm:$0xff]
        %v369 = vld [vmem:[#allocation7 + $0x318] sm:$0xff]
        %v370 = vld [vmem:[#allocation7 + $0x320] sm:$0xff]
        %v371 = vld [vmem:[#allocation7 + $0x328] sm:$0xff]
        %v372 = vld [vmem:[#allocation7 + $0x330] sm:$0xff]
        %v373 = vld [vmem:[#allocation7 + $0x338] sm:$0xff]
        %v374 = vld [vmem:[#allocation7 + $0x340] sm:$0xff]
        %v375 = vld [vmem:[#allocation7 + $0x348] sm:$0xff]
        %v376 = vld [vmem:[#allocation7 + $0x350] sm:$0xff]
        %v377 = vld [vmem:[#allocation7 + $0x358] sm:$0xff]
        %v378 = vld [vmem:[#allocation7 + $0x360] sm:$0xff]
        %v379 = vld [vmem:[#allocation7 + $0x368] sm:$0xff]
        %v380 = vld [vmem:[#allocation7 + $0x370] sm:$0xff]
        %v381 = vld [vmem:[#allocation7 + $0x378] sm:$0xff]
        %v382 = vld [vmem:[#allocation7 + $0x380] sm:$0xff]
        %v383 = vld [vmem:[#allocation7 + $0x388] sm:$0xff]
        %v384 = vld [vmem:[#allocation7 + $0x390] sm:$0xff]
        %v385 = vld [vmem:[#allocation7 + $0x398] sm:$0xff]
        %v386 = vld [vmem:[#allocation7 + $0x3a0] sm:$0xff]
        %v387 = vld [vmem:[#allocation7 + $0x3a8] sm:$0xff]
        %v388 = vld [vmem:[#allocation7 + $0x3b0] sm:$0xff]
        %v389 = vld [vmem:[#allocation7 + $0x3b8] sm:$0xff]
        %v390 = vld [vmem:[#allocation7 + $0x3c0] sm:$0xff]
        %v391 = vld [vmem:[#allocation7 + $0x3c8] sm:$0xff]
        %v392 = vld [vmem:[#allocation7 + $0x3d0] sm:$0xff]
        %v393 = vld [vmem:[#allocation7 + $0x3d8] sm:$0xff]
        %v394 = vld [vmem:[#allocation7 + $0x3e0] sm:$0xff]
        %v395 = vld [vmem:[#allocation7 + $0x3e8] sm:$0xff]
        %v396 = vld [vmem:[#allocation7 + $0x3f0] sm:$0xff]
        %v397 = vld [vmem:[#allocation7 + $0x3f8] sm:$0xff]
        %s398 = sshra.s32 %s268, 7
        %s399 = sand.u32 %s268, 127
        %s400 = smul.addr %s398, 4
        %s401 = scalar_lea.vmem [#allocation2], %s400
        %v402 = vld [vmem:[%s401] sm:$0xff]
        %v403 = vld [vmem:[%s401 + $0x8] sm:$0xff]
        %v404 = vld [vmem:[%s401 + $0x10] sm:$0xff]
        %v405 = vld [vmem:[%s401 + $0x18] sm:$0xff]
        %v406 = vld [vmem:[%s401 + $0x20] sm:$0xff]
        %v407 = vld [vmem:[%s401 + $0x28] sm:$0xff]
        %v408 = vld [vmem:[%s401 + $0x30] sm:$0xff]
        %v409 = vld [vmem:[%s401 + $0x38] sm:$0xff]
        %s410 = sshra.s32 %s269, 7
        %s411 = sand.u32 %s269, 127
        %s412 = smul.addr %s410, 4
        %s413 = scalar_lea.vmem [#allocation3], %s412
        %v414 = vld [vmem:[%s413] sm:$0xff]
        %v415 = vld [vmem:[%s413 + $0x8] sm:$0xff]
        %v416 = vld [vmem:[%s413 + $0x10] sm:$0xff]
        %v417 = vld [vmem:[%s413 + $0x18] sm:$0xff]
        %v418 = vld [vmem:[%s413 + $0x20] sm:$0xff]
        %v419 = vld [vmem:[%s413 + $0x28] sm:$0xff]
        %v420 = vld [vmem:[%s413 + $0x30] sm:$0xff]
        %v421 = vld [vmem:[%s413 + $0x38] sm:$0xff]
        %v430 = vunpack.c.l.b16 %v414
        %v431 = vunpack.c.h.b16 %v414
        %v432 = vunpack.c.l.b16 %v415
        %v433 = vunpack.c.h.b16 %v415
        %v434 = vunpack.c.l.b16 %v416
        %v435 = vunpack.c.h.b16 %v416
        %v436 = vunpack.c.l.b16 %v417
        %v437 = vunpack.c.h.b16 %v417
        %v438 = vunpack.c.l.b16 %v418
        %v439 = vunpack.c.h.b16 %v418
        %v440 = vunpack.c.l.b16 %v419
        %v441 = vunpack.c.h.b16 %v419
        %v442 = vunpack.c.l.b16 %v420
        %v443 = vunpack.c.h.b16 %v420
        %v444 = vunpack.c.l.b16 %v421
        %v445 = vunpack.c.h.b16 %v421
        %v446 = vpack.c.b16 %v434, %v430
        %v447 = vpack.c.b16 %v435, %v431
        %v448 = vpack.c.b16 %v436, %v432
        %v449 = vpack.c.b16 %v437, %v433
        %v450 = vpack.c.b16 %v442, %v438
        %v451 = vpack.c.b16 %v443, %v439
        %v452 = vpack.c.b16 %v444, %v440
        %v453 = vpack.c.b16 %v445, %v441
        %v590 = vunpack.c.l.b16 %v270
        %v591 = vunpack.c.h.b16 %v270
        %v592 = vunpack.c.l.b16 %v271
        %v593 = vunpack.c.h.b16 %v271
        %v594 = vunpack.c.l.b16 %v272
        %v595 = vunpack.c.h.b16 %v272
        %v596 = vunpack.c.l.b16 %v273
        %v597 = vunpack.c.h.b16 %v273
        %v598 = vunpack.c.l.b16 %v274
        %v599 = vunpack.c.h.b16 %v274
        %v600 = vunpack.c.l.b16 %v275
        %v601 = vunpack.c.h.b16 %v275
        %v602 = vunpack.c.l.b16 %v276
        %v603 = vunpack.c.h.b16 %v276
        %v604 = vunpack.c.l.b16 %v277
        %v605 = vunpack.c.h.b16 %v277
        %v606 = vunpack.c.l.b16 %v278
        %v607 = vunpack.c.h.b16 %v278
        %v608 = vunpack.c.l.b16 %v279
        %v609 = vunpack.c.h.b16 %v279
        %v610 = vunpack.c.l.b16 %v280
        %v611 = vunpack.c.h.b16 %v280
        %v612 = vunpack.c.l.b16 %v281
        %v613 = vunpack.c.h.b16 %v281
        %v614 = vunpack.c.l.b16 %v282
        %v615 = vunpack.c.h.b16 %v282
        %v616 = vunpack.c.l.b16 %v283
        %v617 = vunpack.c.h.b16 %v283
        %v618 = vunpack.c.l.b16 %v284
        %v619 = vunpack.c.h.b16 %v284
        %v620 = vunpack.c.l.b16 %v285
        %v621 = vunpack.c.h.b16 %v285
        %v622 = vunpack.c.l.b16 %v286
        %v623 = vunpack.c.h.b16 %v286
        %v624 = vunpack.c.l.b16 %v287
        %v625 = vunpack.c.h.b16 %v287
        %v626 = vunpack.c.l.b16 %v288
        %v627 = vunpack.c.h.b16 %v288
        %v628 = vunpack.c.l.b16 %v289
        %v629 = vunpack.c.h.b16 %v289
        %v630 = vunpack.c.l.b16 %v290
        %v631 = vunpack.c.h.b16 %v290
        %v632 = vunpack.c.l.b16 %v291
        %v633 = vunpack.c.h.b16 %v291
        %v634 = vunpack.c.l.b16 %v292
        %v635 = vunpack.c.h.b16 %v292
        %v636 = vunpack.c.l.b16 %v293
        %v637 = vunpack.c.h.b16 %v293
        %v638 = vunpack.c.l.b16 %v294
        %v639 = vunpack.c.h.b16 %v294
        %v640 = vunpack.c.l.b16 %v295
        %v641 = vunpack.c.h.b16 %v295
        %v642 = vunpack.c.l.b16 %v296
        %v643 = vunpack.c.h.b16 %v296
        %v644 = vunpack.c.l.b16 %v297
        %v645 = vunpack.c.h.b16 %v297
        %v646 = vunpack.c.l.b16 %v298
        %v647 = vunpack.c.h.b16 %v298
        %v648 = vunpack.c.l.b16 %v299
        %v649 = vunpack.c.h.b16 %v299
        %v650 = vunpack.c.l.b16 %v300
        %v651 = vunpack.c.h.b16 %v300
        %v652 = vunpack.c.l.b16 %v301
        %v653 = vunpack.c.h.b16 %v301
        %v654 = vunpack.c.l.b16 %v302
        %v655 = vunpack.c.h.b16 %v302
        %v656 = vunpack.c.l.b16 %v303
        %v657 = vunpack.c.h.b16 %v303
        %v658 = vunpack.c.l.b16 %v304
        %v659 = vunpack.c.h.b16 %v304
        %v660 = vunpack.c.l.b16 %v305
        %v661 = vunpack.c.h.b16 %v305
        %v662 = vunpack.c.l.b16 %v306
        %v663 = vunpack.c.h.b16 %v306
        %v664 = vunpack.c.l.b16 %v307
        %v665 = vunpack.c.h.b16 %v307
        %v666 = vunpack.c.l.b16 %v308
        %v667 = vunpack.c.h.b16 %v308
        %v668 = vunpack.c.l.b16 %v309
        %v669 = vunpack.c.h.b16 %v309
        %v670 = vunpack.c.l.b16 %v310
        %v671 = vunpack.c.h.b16 %v310
        %v672 = vunpack.c.l.b16 %v311
        %v673 = vunpack.c.h.b16 %v311
        %v674 = vunpack.c.l.b16 %v312
        %v675 = vunpack.c.h.b16 %v312
        %v676 = vunpack.c.l.b16 %v313
        %v677 = vunpack.c.h.b16 %v313
        %v678 = vunpack.c.l.b16 %v314
        %v679 = vunpack.c.h.b16 %v314
        %v680 = vunpack.c.l.b16 %v315
        %v681 = vunpack.c.h.b16 %v315
        %v682 = vunpack.c.l.b16 %v316
        %v683 = vunpack.c.h.b16 %v316
        %v684 = vunpack.c.l.b16 %v317
        %v685 = vunpack.c.h.b16 %v317
        %v686 = vunpack.c.l.b16 %v318
        %v687 = vunpack.c.h.b16 %v318
        %v688 = vunpack.c.l.b16 %v319
        %v689 = vunpack.c.h.b16 %v319
        %v690 = vunpack.c.l.b16 %v320
        %v691 = vunpack.c.h.b16 %v320
        %v692 = vunpack.c.l.b16 %v321
        %v693 = vunpack.c.h.b16 %v321
        %v694 = vunpack.c.l.b16 %v322
        %v695 = vunpack.c.h.b16 %v322
        %v696 = vunpack.c.l.b16 %v323
        %v697 = vunpack.c.h.b16 %v323
        %v698 = vunpack.c.l.b16 %v324
        %v699 = vunpack.c.h.b16 %v324
        %v700 = vunpack.c.l.b16 %v325
        %v701 = vunpack.c.h.b16 %v325
        %v702 = vunpack.c.l.b16 %v326
        %v703 = vunpack.c.h.b16 %v326
        %v704 = vunpack.c.l.b16 %v327
        %v705 = vunpack.c.h.b16 %v327
        %v706 = vunpack.c.l.b16 %v328
        %v707 = vunpack.c.h.b16 %v328
        %v708 = vunpack.c.l.b16 %v329
        %v709 = vunpack.c.h.b16 %v329
        %v710 = vunpack.c.l.b16 %v330
        %v711 = vunpack.c.h.b16 %v330
        %v712 = vunpack.c.l.b16 %v331
        %v713 = vunpack.c.h.b16 %v331
        %v714 = vunpack.c.l.b16 %v332
        %v715 = vunpack.c.h.b16 %v332
        %v716 = vunpack.c.l.b16 %v333
        %v717 = vunpack.c.h.b16 %v333
        %v718 = vunpack.c.l.b16 %v334
        %v719 = vunpack.c.h.b16 %v334
        %v720 = vunpack.c.l.b16 %v335
        %v721 = vunpack.c.h.b16 %v335
        %v722 = vunpack.c.l.b16 %v336
        %v723 = vunpack.c.h.b16 %v336
        %v724 = vunpack.c.l.b16 %v337
        %v725 = vunpack.c.h.b16 %v337
        %v726 = vunpack.c.l.b16 %v338
        %v727 = vunpack.c.h.b16 %v338
        %v728 = vunpack.c.l.b16 %v339
        %v729 = vunpack.c.h.b16 %v339
        %v730 = vunpack.c.l.b16 %v340
        %v731 = vunpack.c.h.b16 %v340
        %v732 = vunpack.c.l.b16 %v341
        %v733 = vunpack.c.h.b16 %v341
        %v734 = vunpack.c.l.b16 %v342
        %v735 = vunpack.c.h.b16 %v342
        %v736 = vunpack.c.l.b16 %v343
        %v737 = vunpack.c.h.b16 %v343
        %v738 = vunpack.c.l.b16 %v344
        %v739 = vunpack.c.h.b16 %v344
        %v740 = vunpack.c.l.b16 %v345
        %v741 = vunpack.c.h.b16 %v345
        %v742 = vunpack.c.l.b16 %v346
        %v743 = vunpack.c.h.b16 %v346
        %v744 = vunpack.c.l.b16 %v347
        %v745 = vunpack.c.h.b16 %v347
        %v746 = vunpack.c.l.b16 %v348
        %v747 = vunpack.c.h.b16 %v348
        %v748 = vunpack.c.l.b16 %v349
        %v749 = vunpack.c.h.b16 %v349
        %v750 = vunpack.c.l.b16 %v350
        %v751 = vunpack.c.h.b16 %v350
        %v752 = vunpack.c.l.b16 %v351
        %v753 = vunpack.c.h.b16 %v351
        %v754 = vunpack.c.l.b16 %v352
        %v755 = vunpack.c.h.b16 %v352
        %v756 = vunpack.c.l.b16 %v353
        %v757 = vunpack.c.h.b16 %v353
        %v758 = vunpack.c.l.b16 %v354
        %v759 = vunpack.c.h.b16 %v354
        %v760 = vunpack.c.l.b16 %v355
        %v761 = vunpack.c.h.b16 %v355
        %v762 = vunpack.c.l.b16 %v356
        %v763 = vunpack.c.h.b16 %v356
        %v764 = vunpack.c.l.b16 %v357
        %v765 = vunpack.c.h.b16 %v357
        %v766 = vunpack.c.l.b16 %v358
        %v767 = vunpack.c.h.b16 %v358
        %v768 = vunpack.c.l.b16 %v359
        %v769 = vunpack.c.h.b16 %v359
        %v770 = vunpack.c.l.b16 %v360
        %v771 = vunpack.c.h.b16 %v360
        %v772 = vunpack.c.l.b16 %v361
        %v773 = vunpack.c.h.b16 %v361
        %v774 = vunpack.c.l.b16 %v362
        %v775 = vunpack.c.h.b16 %v362
        %v776 = vunpack.c.l.b16 %v363
        %v777 = vunpack.c.h.b16 %v363
        %v778 = vunpack.c.l.b16 %v364
        %v779 = vunpack.c.h.b16 %v364
        %v780 = vunpack.c.l.b16 %v365
        %v781 = vunpack.c.h.b16 %v365
        %v782 = vunpack.c.l.b16 %v366
        %v783 = vunpack.c.h.b16 %v366
        %v784 = vunpack.c.l.b16 %v367
        %v785 = vunpack.c.h.b16 %v367
        %v786 = vunpack.c.l.b16 %v368
        %v787 = vunpack.c.h.b16 %v368
        %v788 = vunpack.c.l.b16 %v369
        %v789 = vunpack.c.h.b16 %v369
        %v790 = vunpack.c.l.b16 %v370
        %v791 = vunpack.c.h.b16 %v370
        %v792 = vunpack.c.l.b16 %v371
        %v793 = vunpack.c.h.b16 %v371
        %v794 = vunpack.c.l.b16 %v372
        %v795 = vunpack.c.h.b16 %v372
        %v796 = vunpack.c.l.b16 %v373
        %v797 = vunpack.c.h.b16 %v373
        %v798 = vunpack.c.l.b16 %v374
        %v799 = vunpack.c.h.b16 %v374
        %v800 = vunpack.c.l.b16 %v375
        %v801 = vunpack.c.h.b16 %v375
        %v802 = vunpack.c.l.b16 %v376
        %v803 = vunpack.c.h.b16 %v376
        %v804 = vunpack.c.l.b16 %v377
        %v805 = vunpack.c.h.b16 %v377
        %v806 = vunpack.c.l.b16 %v378
        %v807 = vunpack.c.h.b16 %v378
        %v808 = vunpack.c.l.b16 %v379
        %v809 = vunpack.c.h.b16 %v379
        %v810 = vunpack.c.l.b16 %v380
        %v811 = vunpack.c.h.b16 %v380
        %v812 = vunpack.c.l.b16 %v381
        %v813 = vunpack.c.h.b16 %v381
        %v814 = vunpack.c.l.b16 %v382
        %v815 = vunpack.c.h.b16 %v382
        %v816 = vunpack.c.l.b16 %v383
        %v817 = vunpack.c.h.b16 %v383
        %v818 = vunpack.c.l.b16 %v384
        %v819 = vunpack.c.h.b16 %v384
        %v820 = vunpack.c.l.b16 %v385
        %v821 = vunpack.c.h.b16 %v385
        %v822 = vunpack.c.l.b16 %v386
        %v823 = vunpack.c.h.b16 %v386
        %v824 = vunpack.c.l.b16 %v387
        %v825 = vunpack.c.h.b16 %v387
        %v826 = vunpack.c.l.b16 %v388
        %v827 = vunpack.c.h.b16 %v388
        %v828 = vunpack.c.l.b16 %v389
        %v829 = vunpack.c.h.b16 %v389
        %v830 = vunpack.c.l.b16 %v390
        %v831 = vunpack.c.h.b16 %v390
        %v832 = vunpack.c.l.b16 %v391
        %v833 = vunpack.c.h.b16 %v391
        %v834 = vunpack.c.l.b16 %v392
        %v835 = vunpack.c.h.b16 %v392
        %v836 = vunpack.c.l.b16 %v393
        %v837 = vunpack.c.h.b16 %v393
        %v838 = vunpack.c.l.b16 %v394
        %v839 = vunpack.c.h.b16 %v394
        %v840 = vunpack.c.l.b16 %v395
        %v841 = vunpack.c.h.b16 %v395
        %v842 = vunpack.c.l.b16 %v396
        %v843 = vunpack.c.h.b16 %v396
        %v844 = vunpack.c.l.b16 %v397
        %v845 = vunpack.c.h.b16 %v397
        %v846 = vpack.c.b16 %v594, %v590
        %v847 = vpack.c.b16 %v595, %v591
        %v848 = vpack.c.b16 %v596, %v592
        %v849 = vpack.c.b16 %v597, %v593
        %v850 = vpack.c.b16 %v602, %v598
        %v851 = vpack.c.b16 %v603, %v599
        %v852 = vpack.c.b16 %v604, %v600
        %v853 = vpack.c.b16 %v605, %v601
        %v854 = vpack.c.b16 %v610, %v606
        %v855 = vpack.c.b16 %v611, %v607
        %v856 = vpack.c.b16 %v612, %v608
        %v857 = vpack.c.b16 %v613, %v609
        %v858 = vpack.c.b16 %v618, %v614
        %v859 = vpack.c.b16 %v619, %v615
        %v860 = vpack.c.b16 %v620, %v616
        %v861 = vpack.c.b16 %v621, %v617
        %v862 = vpack.c.b16 %v626, %v622
        %v863 = vpack.c.b16 %v627, %v623
        %v864 = vpack.c.b16 %v628, %v624
        %v865 = vpack.c.b16 %v629, %v625
        %v866 = vpack.c.b16 %v634, %v630
        %v867 = vpack.c.b16 %v635, %v631
        %v868 = vpack.c.b16 %v636, %v632
        %v869 = vpack.c.b16 %v637, %v633
        %v870 = vpack.c.b16 %v642, %v638
        %v871 = vpack.c.b16 %v643, %v639
        %v872 = vpack.c.b16 %v644, %v640
        %v873 = vpack.c.b16 %v645, %v641
        %v874 = vpack.c.b16 %v650, %v646
        %v875 = vpack.c.b16 %v651, %v647
        %v876 = vpack.c.b16 %v652, %v648
        %v877 = vpack.c.b16 %v653, %v649
        %v878 = vpack.c.b16 %v658, %v654
        %v879 = vpack.c.b16 %v659, %v655
        %v880 = vpack.c.b16 %v660, %v656
        %v881 = vpack.c.b16 %v661, %v657
        %v882 = vpack.c.b16 %v666, %v662
        %v883 = vpack.c.b16 %v667, %v663
        %v884 = vpack.c.b16 %v668, %v664
        %v885 = vpack.c.b16 %v669, %v665
        %v886 = vpack.c.b16 %v674, %v670
        %v887 = vpack.c.b16 %v675, %v671
        %v888 = vpack.c.b16 %v676, %v672
        %v889 = vpack.c.b16 %v677, %v673
        %v890 = vpack.c.b16 %v682, %v678
        %v891 = vpack.c.b16 %v683, %v679
        %v892 = vpack.c.b16 %v684, %v680
        %v893 = vpack.c.b16 %v685, %v681
        %v894 = vpack.c.b16 %v690, %v686
        %v895 = vpack.c.b16 %v691, %v687
        %v896 = vpack.c.b16 %v692, %v688
        %v897 = vpack.c.b16 %v693, %v689
        %v898 = vpack.c.b16 %v698, %v694
        %v899 = vpack.c.b16 %v699, %v695
        %v900 = vpack.c.b16 %v700, %v696
        %v901 = vpack.c.b16 %v701, %v697
        %v902 = vpack.c.b16 %v706, %v702
        %v903 = vpack.c.b16 %v707, %v703
        %v904 = vpack.c.b16 %v708, %v704
        %v905 = vpack.c.b16 %v709, %v705
        %v906 = vpack.c.b16 %v714, %v710
        %v907 = vpack.c.b16 %v715, %v711
        %v908 = vpack.c.b16 %v716, %v712
        %v909 = vpack.c.b16 %v717, %v713
        %v910 = vpack.c.b16 %v722, %v718
        %v911 = vpack.c.b16 %v723, %v719
        %v912 = vpack.c.b16 %v724, %v720
        %v913 = vpack.c.b16 %v725, %v721
        %v914 = vpack.c.b16 %v730, %v726
        %v915 = vpack.c.b16 %v731, %v727
        %v916 = vpack.c.b16 %v732, %v728
        %v917 = vpack.c.b16 %v733, %v729
        %v918 = vpack.c.b16 %v738, %v734
        %v919 = vpack.c.b16 %v739, %v735
        %v920 = vpack.c.b16 %v740, %v736
        %v921 = vpack.c.b16 %v741, %v737
        %v922 = vpack.c.b16 %v746, %v742
        %v923 = vpack.c.b16 %v747, %v743
        %v924 = vpack.c.b16 %v748, %v744
        %v925 = vpack.c.b16 %v749, %v745
        %v926 = vpack.c.b16 %v754, %v750
        %v927 = vpack.c.b16 %v755, %v751
        %v928 = vpack.c.b16 %v756, %v752
        %v929 = vpack.c.b16 %v757, %v753
        %v930 = vpack.c.b16 %v762, %v758
        %v931 = vpack.c.b16 %v763, %v759
        %v932 = vpack.c.b16 %v764, %v760
        %v933 = vpack.c.b16 %v765, %v761
        %v934 = vpack.c.b16 %v770, %v766
        %v935 = vpack.c.b16 %v771, %v767
        %v936 = vpack.c.b16 %v772, %v768
        %v937 = vpack.c.b16 %v773, %v769
        %v938 = vpack.c.b16 %v778, %v774
        %v939 = vpack.c.b16 %v779, %v775
        %v940 = vpack.c.b16 %v780, %v776
        %v941 = vpack.c.b16 %v781, %v777
        %v942 = vpack.c.b16 %v786, %v782
        %v943 = vpack.c.b16 %v787, %v783
        %v944 = vpack.c.b16 %v788, %v784
        %v945 = vpack.c.b16 %v789, %v785
        %v946 = vpack.c.b16 %v794, %v790
        %v947 = vpack.c.b16 %v795, %v791
        %v948 = vpack.c.b16 %v796, %v792
        %v949 = vpack.c.b16 %v797, %v793
        %v950 = vpack.c.b16 %v802, %v798
        %v951 = vpack.c.b16 %v803, %v799
        %v952 = vpack.c.b16 %v804, %v800
        %v953 = vpack.c.b16 %v805, %v801
        %v954 = vpack.c.b16 %v810, %v806
        %v955 = vpack.c.b16 %v811, %v807
        %v956 = vpack.c.b16 %v812, %v808
        %v957 = vpack.c.b16 %v813, %v809
        %v958 = vpack.c.b16 %v818, %v814
        %v959 = vpack.c.b16 %v819, %v815
        %v960 = vpack.c.b16 %v820, %v816
        %v961 = vpack.c.b16 %v821, %v817
        %v962 = vpack.c.b16 %v826, %v822
        %v963 = vpack.c.b16 %v827, %v823
        %v964 = vpack.c.b16 %v828, %v824
        %v965 = vpack.c.b16 %v829, %v825
        %v966 = vpack.c.b16 %v834, %v830
        %v967 = vpack.c.b16 %v835, %v831
        %v968 = vpack.c.b16 %v836, %v832
        %v969 = vpack.c.b16 %v837, %v833
        %v970 = vpack.c.b16 %v842, %v838
        %v971 = vpack.c.b16 %v843, %v839
        %v972 = vpack.c.b16 %v844, %v840
        %v973 = vpack.c.b16 %v845, %v841
        %1102 = vmatpush.bf16.xpose.msra.mxu0 %v874
        %1103 = vmatpush.bf16.xpose.msra.mxu0 %v870
        %1104 = vmatpush.bf16.xpose.msra.mxu0 %v866
        %1105 = vmatpush.bf16.xpose.msra.mxu0 %v862
        %1106 = vmatpush.bf16.xpose.msra.mxu0 %v858
        %1107 = vmatpush.bf16.xpose.msra.mxu0 %v854
        %1108 = vmatpush.bf16.xpose.msra.mxu0 %v850
        %1109 = vmatpush.bf16.xpose.msra.mxu0 %v846
        %1110 = vmatmul.bf16.gmra.mxu0 %v446
        %v1111 = vpop.f32.mrf.mxu0
        %v1112 = vadd.f32 0.0, %v1111
        %v1113 = vpop.f32.mrf.mxu0
        %v1114 = vadd.f32 0.0, %v1113
        %1115 = vmatmul.bf16.gmra.mxu0 %v450
        %v1116 = vpop.f32.mrf.mxu0
        %v1117 = vadd.f32 0.0, %v1116
        %v1118 = vpop.f32.mrf.mxu0
        %v1119 = vadd.f32 0.0, %v1118
        %1120 = vdwg.mxu0
        %1121 = vmatpush.bf16.xpose.msra.mxu0 %v875
        %1122 = vmatpush.bf16.xpose.msra.mxu0 %v871
        %1123 = vmatpush.bf16.xpose.msra.mxu0 %v867
        %1124 = vmatpush.bf16.xpose.msra.mxu0 %v863
        %1125 = vmatpush.bf16.xpose.msra.mxu0 %v859
        %1126 = vmatpush.bf16.xpose.msra.mxu0 %v855
        %1127 = vmatpush.bf16.xpose.msra.mxu0 %v851
        %1128 = vmatpush.bf16.xpose.msra.mxu0 %v847
        %1129 = vmatmul.bf16.gmra.mxu0 %v447
        %v1130 = vpop.f32.mrf.mxu0
        %v1131 = vadd.f32 %v1112, %v1130
        %v1132 = vpop.f32.mrf.mxu0
        %v1133 = vadd.f32 %v1114, %v1132
        %1134 = vmatmul.bf16.gmra.mxu0 %v451
        %v1135 = vpop.f32.mrf.mxu0
        %v1136 = vadd.f32 %v1117, %v1135
        %v1137 = vpop.f32.mrf.mxu0
        %v1138 = vadd.f32 %v1119, %v1137
        %1139 = vdwg.mxu0
        %1140 = vmatpush.bf16.xpose.msra.mxu0 %v876
        %1141 = vmatpush.bf16.xpose.msra.mxu0 %v872
        %1142 = vmatpush.bf16.xpose.msra.mxu0 %v868
        %1143 = vmatpush.bf16.xpose.msra.mxu0 %v864
        %1144 = vmatpush.bf16.xpose.msra.mxu0 %v860
        %1145 = vmatpush.bf16.xpose.msra.mxu0 %v856
        %1146 = vmatpush.bf16.xpose.msra.mxu0 %v852
        %1147 = vmatpush.bf16.xpose.msra.mxu0 %v848
        %1148 = vmatmul.bf16.gmra.mxu0 %v448
        %v1149 = vpop.f32.mrf.mxu0
        %v1150 = vadd.f32 %v1131, %v1149
        %v1151 = vpop.f32.mrf.mxu0
        %v1152 = vadd.f32 %v1133, %v1151
        %1153 = vmatmul.bf16.gmra.mxu0 %v452
        %v1154 = vpop.f32.mrf.mxu0
        %v1155 = vadd.f32 %v1136, %v1154
        %v1156 = vpop.f32.mrf.mxu0
        %v1157 = vadd.f32 %v1138, %v1156
        %1158 = vdwg.mxu0
        %1159 = vmatpush.bf16.xpose.msra.mxu0 %v877
        %1160 = vmatpush.bf16.xpose.msra.mxu0 %v873
        %1161 = vmatpush.bf16.xpose.msra.mxu0 %v869
        %1162 = vmatpush.bf16.xpose.msra.mxu0 %v865
        %1163 = vmatpush.bf16.xpose.msra.mxu0 %v861
        %1164 = vmatpush.bf16.xpose.msra.mxu0 %v857
        %1165 = vmatpush.bf16.xpose.msra.mxu0 %v853
        %1166 = vmatpush.bf16.xpose.msra.mxu0 %v849
        %1167 = vmatmul.bf16.gmra.mxu0 %v449
        %v1168 = vpop.f32.mrf.mxu0
        %v1169 = vadd.f32 %v1150, %v1168
        %v1170 = vpop.f32.mrf.mxu0
        %v1171 = vadd.f32 %v1152, %v1170
        %1172 = vmatmul.bf16.gmra.mxu0 %v453
        %v1173 = vpop.f32.mrf.mxu0
        %v1174 = vadd.f32 %v1155, %v1173
        %v1175 = vpop.f32.mrf.mxu0
        %v1176 = vadd.f32 %v1157, %v1175
        %1177 = vdwg.mxu0
        %1178 = vmatpush.bf16.xpose.msra.mxu0 %v906
        %1179 = vmatpush.bf16.xpose.msra.mxu0 %v902
        %1180 = vmatpush.bf16.xpose.msra.mxu0 %v898
        %1181 = vmatpush.bf16.xpose.msra.mxu0 %v894
        %1182 = vmatpush.bf16.xpose.msra.mxu0 %v890
        %1183 = vmatpush.bf16.xpose.msra.mxu0 %v886
        %1184 = vmatpush.bf16.xpose.msra.mxu0 %v882
        %1185 = vmatpush.bf16.xpose.msra.mxu0 %v878
        %1186 = vmatmul.bf16.gmra.mxu0 %v446
        %v1187 = vpop.f32.mrf.mxu0
        %v1188 = vadd.f32 0.0, %v1187
        %v1189 = vpop.f32.mrf.mxu0
        %v1190 = vadd.f32 0.0, %v1189
        %1191 = vmatmul.bf16.gmra.mxu0 %v450
        %v1192 = vpop.f32.mrf.mxu0
        %v1193 = vadd.f32 0.0, %v1192
        %v1194 = vpop.f32.mrf.mxu0
        %v1195 = vadd.f32 0.0, %v1194
        %1196 = vdwg.mxu0
        %1197 = vmatpush.bf16.xpose.msra.mxu0 %v907
        %1198 = vmatpush.bf16.xpose.msra.mxu0 %v903
        %1199 = vmatpush.bf16.xpose.msra.mxu0 %v899
        %1200 = vmatpush.bf16.xpose.msra.mxu0 %v895
        %1201 = vmatpush.bf16.xpose.msra.mxu0 %v891
        %1202 = vmatpush.bf16.xpose.msra.mxu0 %v887
        %1203 = vmatpush.bf16.xpose.msra.mxu0 %v883
        %1204 = vmatpush.bf16.xpose.msra.mxu0 %v879
        %1205 = vmatmul.bf16.gmra.mxu0 %v447
        %v1206 = vpop.f32.mrf.mxu0
        %v1207 = vadd.f32 %v1188, %v1206
        %v1208 = vpop.f32.mrf.mxu0
        %v1209 = vadd.f32 %v1190, %v1208
        %1210 = vmatmul.bf16.gmra.mxu0 %v451
        %v1211 = vpop.f32.mrf.mxu0
        %v1212 = vadd.f32 %v1193, %v1211
        %v1213 = vpop.f32.mrf.mxu0
        %v1214 = vadd.f32 %v1195, %v1213
        %1215 = vdwg.mxu0
        %1216 = vmatpush.bf16.xpose.msra.mxu0 %v908
        %1217 = vmatpush.bf16.xpose.msra.mxu0 %v904
        %1218 = vmatpush.bf16.xpose.msra.mxu0 %v900
        %1219 = vmatpush.bf16.xpose.msra.mxu0 %v896
        %1220 = vmatpush.bf16.xpose.msra.mxu0 %v892
        %1221 = vmatpush.bf16.xpose.msra.mxu0 %v888
        %1222 = vmatpush.bf16.xpose.msra.mxu0 %v884
        %1223 = vmatpush.bf16.xpose.msra.mxu0 %v880
        %1224 = vmatmul.bf16.gmra.mxu0 %v448
        %v1225 = vpop.f32.mrf.mxu0
        %v1226 = vadd.f32 %v1207, %v1225
        %v1227 = vpop.f32.mrf.mxu0
        %v1228 = vadd.f32 %v1209, %v1227
        %1229 = vmatmul.bf16.gmra.mxu0 %v452
        %v1230 = vpop.f32.mrf.mxu0
        %v1231 = vadd.f32 %v1212, %v1230
        %v1232 = vpop.f32.mrf.mxu0
        %v1233 = vadd.f32 %v1214, %v1232
        %1234 = vdwg.mxu0
        %1235 = vmatpush.bf16.xpose.msra.mxu0 %v909
        %1236 = vmatpush.bf16.xpose.msra.mxu0 %v905
        %1237 = vmatpush.bf16.xpose.msra.mxu0 %v901
        %1238 = vmatpush.bf16.xpose.msra.mxu0 %v897
        %1239 = vmatpush.bf16.xpose.msra.mxu0 %v893
        %1240 = vmatpush.bf16.xpose.msra.mxu0 %v889
        %1241 = vmatpush.bf16.xpose.msra.mxu0 %v885
        %1242 = vmatpush.bf16.xpose.msra.mxu0 %v881
        %1243 = vmatmul.bf16.gmra.mxu0 %v449
        %v1244 = vpop.f32.mrf.mxu0
        %v1245 = vadd.f32 %v1226, %v1244
        %v1246 = vpop.f32.mrf.mxu0
        %v1247 = vadd.f32 %v1228, %v1246
        %1248 = vmatmul.bf16.gmra.mxu0 %v453
        %v1249 = vpop.f32.mrf.mxu0
        %v1250 = vadd.f32 %v1231, %v1249
        %v1251 = vpop.f32.mrf.mxu0
        %v1252 = vadd.f32 %v1233, %v1251
        %1253 = vdwg.mxu0
        %1254 = vmatpush.bf16.xpose.msra.mxu0 %v938
        %1255 = vmatpush.bf16.xpose.msra.mxu0 %v934
        %1256 = vmatpush.bf16.xpose.msra.mxu0 %v930
        %1257 = vmatpush.bf16.xpose.msra.mxu0 %v926
        %1258 = vmatpush.bf16.xpose.msra.mxu0 %v922
        %1259 = vmatpush.bf16.xpose.msra.mxu0 %v918
        %1260 = vmatpush.bf16.xpose.msra.mxu0 %v914
        %1261 = vmatpush.bf16.xpose.msra.mxu0 %v910
        %1262 = vmatmul.bf16.gmra.mxu0 %v446
        %v1263 = vpop.f32.mrf.mxu0
        %v1264 = vadd.f32 0.0, %v1263
        %v1265 = vpop.f32.mrf.mxu0
        %v1266 = vadd.f32 0.0, %v1265
        %1267 = vmatmul.bf16.gmra.mxu0 %v450
        %v1268 = vpop.f32.mrf.mxu0
        %v1269 = vadd.f32 0.0, %v1268
        %v1270 = vpop.f32.mrf.mxu0
        %v1271 = vadd.f32 0.0, %v1270
        %1272 = vdwg.mxu0
        %1273 = vmatpush.bf16.xpose.msra.mxu0 %v939
        %1274 = vmatpush.bf16.xpose.msra.mxu0 %v935
        %1275 = vmatpush.bf16.xpose.msra.mxu0 %v931
        %1276 = vmatpush.bf16.xpose.msra.mxu0 %v927
        %1277 = vmatpush.bf16.xpose.msra.mxu0 %v923
        %1278 = vmatpush.bf16.xpose.msra.mxu0 %v919
        %1279 = vmatpush.bf16.xpose.msra.mxu0 %v915
        %1280 = vmatpush.bf16.xpose.msra.mxu0 %v911
        %1281 = vmatmul.bf16.gmra.mxu0 %v447
        %v1282 = vpop.f32.mrf.mxu0
        %v1283 = vadd.f32 %v1264, %v1282
        %v1284 = vpop.f32.mrf.mxu0
        %v1285 = vadd.f32 %v1266, %v1284
        %1286 = vmatmul.bf16.gmra.mxu0 %v451
        %v1287 = vpop.f32.mrf.mxu0
        %v1288 = vadd.f32 %v1269, %v1287
        %v1289 = vpop.f32.mrf.mxu0
        %v1290 = vadd.f32 %v1271, %v1289
        %1291 = vdwg.mxu0
        %1292 = vmatpush.bf16.xpose.msra.mxu0 %v940
        %1293 = vmatpush.bf16.xpose.msra.mxu0 %v936
        %1294 = vmatpush.bf16.xpose.msra.mxu0 %v932
        %1295 = vmatpush.bf16.xpose.msra.mxu0 %v928
        %1296 = vmatpush.bf16.xpose.msra.mxu0 %v924
        %1297 = vmatpush.bf16.xpose.msra.mxu0 %v920
        %1298 = vmatpush.bf16.xpose.msra.mxu0 %v916
        %1299 = vmatpush.bf16.xpose.msra.mxu0 %v912
        %1300 = vmatmul.bf16.gmra.mxu0 %v448
        %v1301 = vpop.f32.mrf.mxu0
        %v1302 = vadd.f32 %v1283, %v1301
        %v1303 = vpop.f32.mrf.mxu0
        %v1304 = vadd.f32 %v1285, %v1303
        %1305 = vmatmul.bf16.gmra.mxu0 %v452
        %v1306 = vpop.f32.mrf.mxu0
        %v1307 = vadd.f32 %v1288, %v1306
        %v1308 = vpop.f32.mrf.mxu0
        %v1309 = vadd.f32 %v1290, %v1308
        %1310 = vdwg.mxu0
        %1311 = vmatpush.bf16.xpose.msra.mxu0 %v941
        %1312 = vmatpush.bf16.xpose.msra.mxu0 %v937
        %1313 = vmatpush.bf16.xpose.msra.mxu0 %v933
        %1314 = vmatpush.bf16.xpose.msra.mxu0 %v929
        %1315 = vmatpush.bf16.xpose.msra.mxu0 %v925
        %1316 = vmatpush.bf16.xpose.msra.mxu0 %v921
        %1317 = vmatpush.bf16.xpose.msra.mxu0 %v917
        %1318 = vmatpush.bf16.xpose.msra.mxu0 %v913
        %1319 = vmatmul.bf16.gmra.mxu0 %v449
        %v1320 = vpop.f32.mrf.mxu0
        %v1321 = vadd.f32 %v1302, %v1320
        %v1322 = vpop.f32.mrf.mxu0
        %v1323 = vadd.f32 %v1304, %v1322
        %1324 = vmatmul.bf16.gmra.mxu0 %v453
        %v1325 = vpop.f32.mrf.mxu0
        %v1326 = vadd.f32 %v1307, %v1325
        %v1327 = vpop.f32.mrf.mxu0
        %v1328 = vadd.f32 %v1309, %v1327
        %1329 = vdwg.mxu0
        %1330 = vmatpush.bf16.xpose.msra.mxu0 %v970
        %1331 = vmatpush.bf16.xpose.msra.mxu0 %v966
        %1332 = vmatpush.bf16.xpose.msra.mxu0 %v962
        %1333 = vmatpush.bf16.xpose.msra.mxu0 %v958
        %1334 = vmatpush.bf16.xpose.msra.mxu0 %v954
        %1335 = vmatpush.bf16.xpose.msra.mxu0 %v950
        %1336 = vmatpush.bf16.xpose.msra.mxu0 %v946
        %1337 = vmatpush.bf16.xpose.msra.mxu0 %v942
        %1338 = vmatmul.bf16.gmra.mxu0 %v446
        %v1339 = vpop.f32.mrf.mxu0
        %v1340 = vadd.f32 0.0, %v1339
        %v1341 = vpop.f32.mrf.mxu0
        %v1342 = vadd.f32 0.0, %v1341
        %1343 = vmatmul.bf16.gmra.mxu0 %v450
        %v1344 = vpop.f32.mrf.mxu0
        %v1345 = vadd.f32 0.0, %v1344
        %v1346 = vpop.f32.mrf.mxu0
        %v1347 = vadd.f32 0.0, %v1346
        %1348 = vdwg.mxu0
        %1349 = vmatpush.bf16.xpose.msra.mxu0 %v971
        %1350 = vmatpush.bf16.xpose.msra.mxu0 %v967
        %1351 = vmatpush.bf16.xpose.msra.mxu0 %v963
        %1352 = vmatpush.bf16.xpose.msra.mxu0 %v959
        %1353 = vmatpush.bf16.xpose.msra.mxu0 %v955
        %1354 = vmatpush.bf16.xpose.msra.mxu0 %v951
        %1355 = vmatpush.bf16.xpose.msra.mxu0 %v947
        %1356 = vmatpush.bf16.xpose.msra.mxu0 %v943
        %1357 = vmatmul.bf16.gmra.mxu0 %v447
        %v1358 = vpop.f32.mrf.mxu0
        %v1359 = vadd.f32 %v1340, %v1358
        %v1360 = vpop.f32.mrf.mxu0
        %v1361 = vadd.f32 %v1342, %v1360
        %1362 = vmatmul.bf16.gmra.mxu0 %v451
        %v1363 = vpop.f32.mrf.mxu0
        %v1364 = vadd.f32 %v1345, %v1363
        %v1365 = vpop.f32.mrf.mxu0
        %v1366 = vadd.f32 %v1347, %v1365
        %1367 = vdwg.mxu0
        %1368 = vmatpush.bf16.xpose.msra.mxu0 %v972
        %1369 = vmatpush.bf16.xpose.msra.mxu0 %v968
        %1370 = vmatpush.bf16.xpose.msra.mxu0 %v964
        %1371 = vmatpush.bf16.xpose.msra.mxu0 %v960
        %1372 = vmatpush.bf16.xpose.msra.mxu0 %v956
        %1373 = vmatpush.bf16.xpose.msra.mxu0 %v952
        %1374 = vmatpush.bf16.xpose.msra.mxu0 %v948
        %1375 = vmatpush.bf16.xpose.msra.mxu0 %v944
        %1376 = vmatmul.bf16.gmra.mxu0 %v448
        %v1377 = vpop.f32.mrf.mxu0
        %v1378 = vadd.f32 %v1359, %v1377
        %v1379 = vpop.f32.mrf.mxu0
        %v1380 = vadd.f32 %v1361, %v1379
        %1381 = vmatmul.bf16.gmra.mxu0 %v452
        %v1382 = vpop.f32.mrf.mxu0
        %v1383 = vadd.f32 %v1364, %v1382
        %v1384 = vpop.f32.mrf.mxu0
        %v1385 = vadd.f32 %v1366, %v1384
        %1386 = vdwg.mxu0
        %1387 = vmatpush.bf16.xpose.msra.mxu0 %v973
        %1388 = vmatpush.bf16.xpose.msra.mxu0 %v969
        %1389 = vmatpush.bf16.xpose.msra.mxu0 %v965
        %1390 = vmatpush.bf16.xpose.msra.mxu0 %v961
        %1391 = vmatpush.bf16.xpose.msra.mxu0 %v957
        %1392 = vmatpush.bf16.xpose.msra.mxu0 %v953
        %1393 = vmatpush.bf16.xpose.msra.mxu0 %v949
        %1394 = vmatpush.bf16.xpose.msra.mxu0 %v945
        %1395 = vmatmul.bf16.gmra.mxu0 %v449
        %v1396 = vpop.f32.mrf.mxu0
        %v1397 = vadd.f32 %v1378, %v1396
        %v1398 = vpop.f32.mrf.mxu0
        %v1399 = vadd.f32 %v1380, %v1398
        %1400 = vmatmul.bf16.gmra.mxu0 %v453
        %v1401 = vpop.f32.mrf.mxu0
        %v1402 = vadd.f32 %v1383, %v1401
        %v1403 = vpop.f32.mrf.mxu0
        %v1404 = vadd.f32 %v1385, %v1403
        %1405 = vdwg.mxu0
        %v1414 = vunpack.c.l.b16 %v402
        %v1415 = vunpack.c.h.b16 %v402
        %v1416 = vunpack.c.l.b16 %v403
        %v1417 = vunpack.c.h.b16 %v403
        %v1418 = vunpack.c.l.b16 %v404
        %v1419 = vunpack.c.h.b16 %v404
        %v1420 = vunpack.c.l.b16 %v405
        %v1421 = vunpack.c.h.b16 %v405
        %v1422 = vunpack.c.l.b16 %v406
        %v1423 = vunpack.c.h.b16 %v406
        %v1424 = vunpack.c.l.b16 %v407
        %v1425 = vunpack.c.h.b16 %v407
        %v1426 = vunpack.c.l.b16 %v408
        %v1427 = vunpack.c.h.b16 %v408
        %v1428 = vunpack.c.l.b16 %v409
        %v1429 = vunpack.c.h.b16 %v409
        %v1430 = vpack.c.b16 %v1418, %v1414
        %v1431 = vpack.c.b16 %v1419, %v1415
        %v1432 = vpack.c.b16 %v1420, %v1416
        %v1433 = vpack.c.b16 %v1421, %v1417
        %v1434 = vpack.c.b16 %v1426, %v1422
        %v1435 = vpack.c.b16 %v1427, %v1423
        %v1436 = vpack.c.b16 %v1428, %v1424
        %v1437 = vpack.c.b16 %v1429, %v1425
        %1446 = vmatpush.bf16.msra.mxu0 %v874
        %1447 = vmatpush.bf16.msra.mxu0 %v870
        %1448 = vmatpush.bf16.msra.mxu0 %v866
        %1449 = vmatpush.bf16.msra.mxu0 %v862
        %1450 = vmatpush.bf16.msra.mxu0 %v858
        %1451 = vmatpush.bf16.msra.mxu0 %v854
        %1452 = vmatpush.bf16.msra.mxu0 %v850
        %1453 = vmatpush.bf16.msra.mxu0 %v846
        %1454 = vmatmul.bf16.gmra.mxu0 %v1430
        %v1455 = vpop.f32.mrf.mxu0
        %v1456 = vadd.f32 0.0, %v1455
        %v1457 = vpop.f32.mrf.mxu0
        %v1458 = vadd.f32 0.0, %v1457
        %1459 = vmatmul.bf16.gmra.mxu0 %v1434
        %v1460 = vpop.f32.mrf.mxu0
        %v1461 = vadd.f32 0.0, %v1460
        %v1462 = vpop.f32.mrf.mxu0
        %v1463 = vadd.f32 0.0, %v1462
        %1464 = vdwg.mxu0
        %1465 = vmatpush.bf16.msra.mxu0 %v906
        %1466 = vmatpush.bf16.msra.mxu0 %v902
        %1467 = vmatpush.bf16.msra.mxu0 %v898
        %1468 = vmatpush.bf16.msra.mxu0 %v894
        %1469 = vmatpush.bf16.msra.mxu0 %v890
        %1470 = vmatpush.bf16.msra.mxu0 %v886
        %1471 = vmatpush.bf16.msra.mxu0 %v882
        %1472 = vmatpush.bf16.msra.mxu0 %v878
        %1473 = vmatmul.bf16.gmra.mxu0 %v1431
        %v1474 = vpop.f32.mrf.mxu0
        %v1475 = vadd.f32 %v1456, %v1474
        %v1476 = vpop.f32.mrf.mxu0
        %v1477 = vadd.f32 %v1458, %v1476
        %1478 = vmatmul.bf16.gmra.mxu0 %v1435
        %v1479 = vpop.f32.mrf.mxu0
        %v1480 = vadd.f32 %v1461, %v1479
        %v1481 = vpop.f32.mrf.mxu0
        %v1482 = vadd.f32 %v1463, %v1481
        %1483 = vdwg.mxu0
        %1484 = vmatpush.bf16.msra.mxu0 %v938
        %1485 = vmatpush.bf16.msra.mxu0 %v934
        %1486 = vmatpush.bf16.msra.mxu0 %v930
        %1487 = vmatpush.bf16.msra.mxu0 %v926
        %1488 = vmatpush.bf16.msra.mxu0 %v922
        %1489 = vmatpush.bf16.msra.mxu0 %v918
        %1490 = vmatpush.bf16.msra.mxu0 %v914
        %1491 = vmatpush.bf16.msra.mxu0 %v910
        %1492 = vmatmul.bf16.gmra.mxu0 %v1432
        %v1493 = vpop.f32.mrf.mxu0
        %v1494 = vadd.f32 %v1475, %v1493
        %v1495 = vpop.f32.mrf.mxu0
        %v1496 = vadd.f32 %v1477, %v1495
        %1497 = vmatmul.bf16.gmra.mxu0 %v1436
        %v1498 = vpop.f32.mrf.mxu0
        %v1499 = vadd.f32 %v1480, %v1498
        %v1500 = vpop.f32.mrf.mxu0
        %v1501 = vadd.f32 %v1482, %v1500
        %1502 = vdwg.mxu0
        %1503 = vmatpush.bf16.msra.mxu0 %v970
        %1504 = vmatpush.bf16.msra.mxu0 %v966
        %1505 = vmatpush.bf16.msra.mxu0 %v962
        %1506 = vmatpush.bf16.msra.mxu0 %v958
        %1507 = vmatpush.bf16.msra.mxu0 %v954
        %1508 = vmatpush.bf16.msra.mxu0 %v950
        %1509 = vmatpush.bf16.msra.mxu0 %v946
        %1510 = vmatpush.bf16.msra.mxu0 %v942
        %1511 = vmatmul.bf16.gmra.mxu0 %v1433
        %v1512 = vpop.f32.mrf.mxu0
        %v1513 = vadd.f32 %v1494, %v1512
        %v1514 = vpop.f32.mrf.mxu0
        %v1515 = vadd.f32 %v1496, %v1514
        %1516 = vmatmul.bf16.gmra.mxu0 %v1437
        %v1517 = vpop.f32.mrf.mxu0
        %v1518 = vadd.f32 %v1499, %v1517
        %v1519 = vpop.f32.mrf.mxu0
        %v1520 = vadd.f32 %v1501, %v1519
        %1521 = vdwg.mxu0
        %1522 = vmatpush.bf16.msra.mxu0 %v875
        %1523 = vmatpush.bf16.msra.mxu0 %v871
        %1524 = vmatpush.bf16.msra.mxu0 %v867
        %1525 = vmatpush.bf16.msra.mxu0 %v863
        %1526 = vmatpush.bf16.msra.mxu0 %v859
        %1527 = vmatpush.bf16.msra.mxu0 %v855
        %1528 = vmatpush.bf16.msra.mxu0 %v851
        %1529 = vmatpush.bf16.msra.mxu0 %v847
        %1530 = vmatmul.bf16.gmra.mxu0 %v1430
        %v1531 = vpop.f32.mrf.mxu0
        %v1532 = vadd.f32 0.0, %v1531
        %v1533 = vpop.f32.mrf.mxu0
        %v1534 = vadd.f32 0.0, %v1533
        %1535 = vmatmul.bf16.gmra.mxu0 %v1434
        %v1536 = vpop.f32.mrf.mxu0
        %v1537 = vadd.f32 0.0, %v1536
        %v1538 = vpop.f32.mrf.mxu0
        %v1539 = vadd.f32 0.0, %v1538
        %1540 = vdwg.mxu0
        %1541 = vmatpush.bf16.msra.mxu0 %v907
        %1542 = vmatpush.bf16.msra.mxu0 %v903
        %1543 = vmatpush.bf16.msra.mxu0 %v899
        %1544 = vmatpush.bf16.msra.mxu0 %v895
        %1545 = vmatpush.bf16.msra.mxu0 %v891
        %1546 = vmatpush.bf16.msra.mxu0 %v887
        %1547 = vmatpush.bf16.msra.mxu0 %v883
        %1548 = vmatpush.bf16.msra.mxu0 %v879
        %1549 = vmatmul.bf16.gmra.mxu0 %v1431
        %v1550 = vpop.f32.mrf.mxu0
        %v1551 = vadd.f32 %v1532, %v1550
        %v1552 = vpop.f32.mrf.mxu0
        %v1553 = vadd.f32 %v1534, %v1552
        %1554 = vmatmul.bf16.gmra.mxu0 %v1435
        %v1555 = vpop.f32.mrf.mxu0
        %v1556 = vadd.f32 %v1537, %v1555
        %v1557 = vpop.f32.mrf.mxu0
        %v1558 = vadd.f32 %v1539, %v1557
        %1559 = vdwg.mxu0
        %1560 = vmatpush.bf16.msra.mxu0 %v939
        %1561 = vmatpush.bf16.msra.mxu0 %v935
        %1562 = vmatpush.bf16.msra.mxu0 %v931
        %1563 = vmatpush.bf16.msra.mxu0 %v927
        %1564 = vmatpush.bf16.msra.mxu0 %v923
        %1565 = vmatpush.bf16.msra.mxu0 %v919
        %1566 = vmatpush.bf16.msra.mxu0 %v915
        %1567 = vmatpush.bf16.msra.mxu0 %v911
        %1568 = vmatmul.bf16.gmra.mxu0 %v1432
        %v1569 = vpop.f32.mrf.mxu0
        %v1570 = vadd.f32 %v1551, %v1569
        %v1571 = vpop.f32.mrf.mxu0
        %v1572 = vadd.f32 %v1553, %v1571
        %1573 = vmatmul.bf16.gmra.mxu0 %v1436
        %v1574 = vpop.f32.mrf.mxu0
        %v1575 = vadd.f32 %v1556, %v1574
        %v1576 = vpop.f32.mrf.mxu0
        %v1577 = vadd.f32 %v1558, %v1576
        %1578 = vdwg.mxu0
        %1579 = vmatpush.bf16.msra.mxu0 %v971
        %1580 = vmatpush.bf16.msra.mxu0 %v967
        %1581 = vmatpush.bf16.msra.mxu0 %v963
        %1582 = vmatpush.bf16.msra.mxu0 %v959
        %1583 = vmatpush.bf16.msra.mxu0 %v955
        %1584 = vmatpush.bf16.msra.mxu0 %v951
        %1585 = vmatpush.bf16.msra.mxu0 %v947
        %1586 = vmatpush.bf16.msra.mxu0 %v943
        %1587 = vmatmul.bf16.gmra.mxu0 %v1433
        %v1588 = vpop.f32.mrf.mxu0
        %v1589 = vadd.f32 %v1570, %v1588
        %v1590 = vpop.f32.mrf.mxu0
        %v1591 = vadd.f32 %v1572, %v1590
        %1592 = vmatmul.bf16.gmra.mxu0 %v1437
        %v1593 = vpop.f32.mrf.mxu0
        %v1594 = vadd.f32 %v1575, %v1593
        %v1595 = vpop.f32.mrf.mxu0
        %v1596 = vadd.f32 %v1577, %v1595
        %1597 = vdwg.mxu0
        %1598 = vmatpush.bf16.msra.mxu0 %v876
        %1599 = vmatpush.bf16.msra.mxu0 %v872
        %1600 = vmatpush.bf16.msra.mxu0 %v868
        %1601 = vmatpush.bf16.msra.mxu0 %v864
        %1602 = vmatpush.bf16.msra.mxu0 %v860
        %1603 = vmatpush.bf16.msra.mxu0 %v856
        %1604 = vmatpush.bf16.msra.mxu0 %v852
        %1605 = vmatpush.bf16.msra.mxu0 %v848
        %1606 = vmatmul.bf16.gmra.mxu0 %v1430
        %v1607 = vpop.f32.mrf.mxu0
        %v1608 = vadd.f32 0.0, %v1607
        %v1609 = vpop.f32.mrf.mxu0
        %v1610 = vadd.f32 0.0, %v1609
        %1611 = vmatmul.bf16.gmra.mxu0 %v1434
        %v1612 = vpop.f32.mrf.mxu0
        %v1613 = vadd.f32 0.0, %v1612
        %v1614 = vpop.f32.mrf.mxu0
        %v1615 = vadd.f32 0.0, %v1614
        %1616 = vdwg.mxu0
        %1617 = vmatpush.bf16.msra.mxu0 %v908
        %1618 = vmatpush.bf16.msra.mxu0 %v904
        %1619 = vmatpush.bf16.msra.mxu0 %v900
        %1620 = vmatpush.bf16.msra.mxu0 %v896
        %1621 = vmatpush.bf16.msra.mxu0 %v892
        %1622 = vmatpush.bf16.msra.mxu0 %v888
        %1623 = vmatpush.bf16.msra.mxu0 %v884
        %1624 = vmatpush.bf16.msra.mxu0 %v880
        %1625 = vmatmul.bf16.gmra.mxu0 %v1431
        %v1626 = vpop.f32.mrf.mxu0
        %v1627 = vadd.f32 %v1608, %v1626
        %v1628 = vpop.f32.mrf.mxu0
        %v1629 = vadd.f32 %v1610, %v1628
        %1630 = vmatmul.bf16.gmra.mxu0 %v1435
        %v1631 = vpop.f32.mrf.mxu0
        %v1632 = vadd.f32 %v1613, %v1631
        %v1633 = vpop.f32.mrf.mxu0
        %v1634 = vadd.f32 %v1615, %v1633
        %1635 = vdwg.mxu0
        %1636 = vmatpush.bf16.msra.mxu0 %v940
        %1637 = vmatpush.bf16.msra.mxu0 %v936
        %1638 = vmatpush.bf16.msra.mxu0 %v932
        %1639 = vmatpush.bf16.msra.mxu0 %v928
        %1640 = vmatpush.bf16.msra.mxu0 %v924
        %1641 = vmatpush.bf16.msra.mxu0 %v920
        %1642 = vmatpush.bf16.msra.mxu0 %v916
        %1643 = vmatpush.bf16.msra.mxu0 %v912
        %1644 = vmatmul.bf16.gmra.mxu0 %v1432
        %v1645 = vpop.f32.mrf.mxu0
        %v1646 = vadd.f32 %v1627, %v1645
        %v1647 = vpop.f32.mrf.mxu0
        %v1648 = vadd.f32 %v1629, %v1647
        %1649 = vmatmul.bf16.gmra.mxu0 %v1436
        %v1650 = vpop.f32.mrf.mxu0
        %v1651 = vadd.f32 %v1632, %v1650
        %v1652 = vpop.f32.mrf.mxu0
        %v1653 = vadd.f32 %v1634, %v1652
        %1654 = vdwg.mxu0
        %1655 = vmatpush.bf16.msra.mxu0 %v972
        %1656 = vmatpush.bf16.msra.mxu0 %v968
        %1657 = vmatpush.bf16.msra.mxu0 %v964
        %1658 = vmatpush.bf16.msra.mxu0 %v960
        %1659 = vmatpush.bf16.msra.mxu0 %v956
        %1660 = vmatpush.bf16.msra.mxu0 %v952
        %1661 = vmatpush.bf16.msra.mxu0 %v948
        %1662 = vmatpush.bf16.msra.mxu0 %v944
        %1663 = vmatmul.bf16.gmra.mxu0 %v1433
        %v1664 = vpop.f32.mrf.mxu0
        %v1665 = vadd.f32 %v1646, %v1664
        %v1666 = vpop.f32.mrf.mxu0
        %v1667 = vadd.f32 %v1648, %v1666
        %1668 = vmatmul.bf16.gmra.mxu0 %v1437
        %v1669 = vpop.f32.mrf.mxu0
        %v1670 = vadd.f32 %v1651, %v1669
        %v1671 = vpop.f32.mrf.mxu0
        %v1672 = vadd.f32 %v1653, %v1671
        %1673 = vdwg.mxu0
        %1674 = vmatpush.bf16.msra.mxu0 %v877
        %1675 = vmatpush.bf16.msra.mxu0 %v873
        %1676 = vmatpush.bf16.msra.mxu0 %v869
        %1677 = vmatpush.bf16.msra.mxu0 %v865
        %1678 = vmatpush.bf16.msra.mxu0 %v861
        %1679 = vmatpush.bf16.msra.mxu0 %v857
        %1680 = vmatpush.bf16.msra.mxu0 %v853
        %1681 = vmatpush.bf16.msra.mxu0 %v849
        %1682 = vmatmul.bf16.gmra.mxu0 %v1430
        %v1683 = vpop.f32.mrf.mxu0
        %v1684 = vadd.f32 0.0, %v1683
        %v1685 = vpop.f32.mrf.mxu0
        %v1686 = vadd.f32 0.0, %v1685
        %1687 = vmatmul.bf16.gmra.mxu0 %v1434
        %v1688 = vpop.f32.mrf.mxu0
        %v1689 = vadd.f32 0.0, %v1688
        %v1690 = vpop.f32.mrf.mxu0
        %v1691 = vadd.f32 0.0, %v1690
        %1692 = vdwg.mxu0
        %1693 = vmatpush.bf16.msra.mxu0 %v909
        %1694 = vmatpush.bf16.msra.mxu0 %v905
        %1695 = vmatpush.bf16.msra.mxu0 %v901
        %1696 = vmatpush.bf16.msra.mxu0 %v897
        %1697 = vmatpush.bf16.msra.mxu0 %v893
        %1698 = vmatpush.bf16.msra.mxu0 %v889
        %1699 = vmatpush.bf16.msra.mxu0 %v885
        %1700 = vmatpush.bf16.msra.mxu0 %v881
        %1701 = vmatmul.bf16.gmra.mxu0 %v1431
        %v1702 = vpop.f32.mrf.mxu0
        %v1703 = vadd.f32 %v1684, %v1702
        %v1704 = vpop.f32.mrf.mxu0
        %v1705 = vadd.f32 %v1686, %v1704
        %1706 = vmatmul.bf16.gmra.mxu0 %v1435
        %v1707 = vpop.f32.mrf.mxu0
        %v1708 = vadd.f32 %v1689, %v1707
        %v1709 = vpop.f32.mrf.mxu0
        %v1710 = vadd.f32 %v1691, %v1709
        %1711 = vdwg.mxu0
        %1712 = vmatpush.bf16.msra.mxu0 %v941
        %1713 = vmatpush.bf16.msra.mxu0 %v937
        %1714 = vmatpush.bf16.msra.mxu0 %v933
        %1715 = vmatpush.bf16.msra.mxu0 %v929
        %1716 = vmatpush.bf16.msra.mxu0 %v925
        %1717 = vmatpush.bf16.msra.mxu0 %v921
        %1718 = vmatpush.bf16.msra.mxu0 %v917
        %1719 = vmatpush.bf16.msra.mxu0 %v913
        %1720 = vmatmul.bf16.gmra.mxu0 %v1432
        %v1721 = vpop.f32.mrf.mxu0
        %v1722 = vadd.f32 %v1703, %v1721
        %v1723 = vpop.f32.mrf.mxu0
        %v1724 = vadd.f32 %v1705, %v1723
        %1725 = vmatmul.bf16.gmra.mxu0 %v1436
        %v1726 = vpop.f32.mrf.mxu0
        %v1727 = vadd.f32 %v1708, %v1726
        %v1728 = vpop.f32.mrf.mxu0
        %v1729 = vadd.f32 %v1710, %v1728
        %1730 = vdwg.mxu0
        %1731 = vmatpush.bf16.msra.mxu0 %v973
        %1732 = vmatpush.bf16.msra.mxu0 %v969
        %1733 = vmatpush.bf16.msra.mxu0 %v965
        %1734 = vmatpush.bf16.msra.mxu0 %v961
        %1735 = vmatpush.bf16.msra.mxu0 %v957
        %1736 = vmatpush.bf16.msra.mxu0 %v953
        %1737 = vmatpush.bf16.msra.mxu0 %v949
        %1738 = vmatpush.bf16.msra.mxu0 %v945
        %1739 = vmatmul.bf16.gmra.mxu0 %v1433
        %v1740 = vpop.f32.mrf.mxu0
        %v1741 = vadd.f32 %v1722, %v1740
        %v1742 = vpop.f32.mrf.mxu0
        %v1743 = vadd.f32 %v1724, %v1742
        %1744 = vmatmul.bf16.gmra.mxu0 %v1437
        %v1745 = vpop.f32.mrf.mxu0
        %v1746 = vadd.f32 %v1727, %v1745
        %v1747 = vpop.f32.mrf.mxu0
        %v1748 = vadd.f32 %v1729, %v1747
        %1749 = vdwg.mxu0
        // Predicated region
        $region41: #{tpu_custom_call.1} parent=23 // pred_check
          %p1750 = pneg %p164
        $region42: #{tpu_custom_call.1} parent=23 // pred_check_branch
          %1752 = sbr.rel (%p1750) target = $region44
        $region43: #{tpu_custom_call.1} parent=23 // pred_region
          %1753 = vst [vmem:[#allocation5] sm:$0xff] %v1169
          %1754 = vst [vmem:[#allocation5 + $0x8] sm:$0xff] %v1245
          %1755 = vst [vmem:[#allocation5 + $0x10] sm:$0xff] %v1321
          %1756 = vst [vmem:[#allocation5 + $0x18] sm:$0xff] %v1397
          %1757 = vst [vmem:[#allocation5 + $0x20] sm:$0xff] %v1171
          %1758 = vst [vmem:[#allocation5 + $0x28] sm:$0xff] %v1247
          %1759 = vst [vmem:[#allocation5 + $0x30] sm:$0xff] %v1323
          %1760 = vst [vmem:[#allocation5 + $0x38] sm:$0xff] %v1399
          %1761 = vst [vmem:[#allocation5 + $0x40] sm:$0xff] %v1174
          %1762 = vst [vmem:[#allocation5 + $0x48] sm:$0xff] %v1250
          %1763 = vst [vmem:[#allocation5 + $0x50] sm:$0xff] %v1326
          %1764 = vst [vmem:[#allocation5 + $0x58] sm:$0xff] %v1402
          %1765 = vst [vmem:[#allocation5 + $0x60] sm:$0xff] %v1176
          %1766 = vst [vmem:[#allocation5 + $0x68] sm:$0xff] %v1252
          %1767 = vst [vmem:[#allocation5 + $0x70] sm:$0xff] %v1328
          %1768 = vst [vmem:[#allocation5 + $0x78] sm:$0xff] %v1404
        $region44: #{tpu_custom_call.1} parent=23 // pred_fallthru
          _
        %p1769 = scmp.gt.s32.totalorder %s26, 0
        // Predicated region
        $region45: #{tpu_custom_call.1} parent=23 // pred_check
          %p1770 = pneg %p1769
        $region46: #{tpu_custom_call.1} parent=23 // pred_check_branch
          %1772 = sbr.rel (%p1770) target = $region48
        $region47: #{tpu_custom_call.1} parent=23 // pred_region
          %v1773 = vld [vmem:[#allocation5] sm:$0xff]
          %v1774 = vld [vmem:[#allocation5 + $0x8] sm:$0xff]
          %v1775 = vld [vmem:[#allocation5 + $0x10] sm:$0xff]
          %v1776 = vld [vmem:[#allocation5 + $0x18] sm:$0xff]
          %v1777 = vld [vmem:[#allocation5 + $0x20] sm:$0xff]
          %v1778 = vld [vmem:[#allocation5 + $0x28] sm:$0xff]
          %v1779 = vld [vmem:[#allocation5 + $0x30] sm:$0xff]
          %v1780 = vld [vmem:[#allocation5 + $0x38] sm:$0xff]
          %v1781 = vld [vmem:[#allocation5 + $0x40] sm:$0xff]
          %v1782 = vld [vmem:[#allocation5 + $0x48] sm:$0xff]
          %v1783 = vld [vmem:[#allocation5 + $0x50] sm:$0xff]
          %v1784 = vld [vmem:[#allocation5 + $0x58] sm:$0xff]
          %v1785 = vld [vmem:[#allocation5 + $0x60] sm:$0xff]
          %v1786 = vld [vmem:[#allocation5 + $0x68] sm:$0xff]
          %v1787 = vld [vmem:[#allocation5 + $0x70] sm:$0xff]
          %v1788 = vld [vmem:[#allocation5 + $0x78] sm:$0xff]
          %v1789 = vadd.f32 %v1773, %v1169
          %v1790 = vadd.f32 %v1774, %v1245
          %v1791 = vadd.f32 %v1775, %v1321
          %v1792 = vadd.f32 %v1776, %v1397
          %v1793 = vadd.f32 %v1777, %v1171
          %v1794 = vadd.f32 %v1778, %v1247
          %v1795 = vadd.f32 %v1779, %v1323
          %v1796 = vadd.f32 %v1780, %v1399
          %v1797 = vadd.f32 %v1781, %v1174
          %v1798 = vadd.f32 %v1782, %v1250
          %v1799 = vadd.f32 %v1783, %v1326
          %v1800 = vadd.f32 %v1784, %v1402
          %v1801 = vadd.f32 %v1785, %v1176
          %v1802 = vadd.f32 %v1786, %v1252
          %v1803 = vadd.f32 %v1787, %v1328
          %v1804 = vadd.f32 %v1788, %v1404
          %1805 = vst [vmem:[#allocation5] sm:$0xff] %v1789
          %1806 = vst [vmem:[#allocation5 + $0x8] sm:$0xff] %v1790
          %1807 = vst [vmem:[#allocation5 + $0x10] sm:$0xff] %v1791
          %1808 = vst [vmem:[#allocation5 + $0x18] sm:$0xff] %v1792
          %1809 = vst [vmem:[#allocation5 + $0x20] sm:$0xff] %v1793
          %1810 = vst [vmem:[#allocation5 + $0x28] sm:$0xff] %v1794
          %1811 = vst [vmem:[#allocation5 + $0x30] sm:$0xff] %v1795
          %1812 = vst [vmem:[#allocation5 + $0x38] sm:$0xff] %v1796
          %1813 = vst [vmem:[#allocation5 + $0x40] sm:$0xff] %v1797
          %1814 = vst [vmem:[#allocation5 + $0x48] sm:$0xff] %v1798
          %1815 = vst [vmem:[#allocation5 + $0x50] sm:$0xff] %v1799
          %1816 = vst [vmem:[#allocation5 + $0x58] sm:$0xff] %v1800
          %1817 = vst [vmem:[#allocation5 + $0x60] sm:$0xff] %v1801
          %1818 = vst [vmem:[#allocation5 + $0x68] sm:$0xff] %v1802
          %1819 = vst [vmem:[#allocation5 + $0x70] sm:$0xff] %v1803
          %1820 = vst [vmem:[#allocation5 + $0x78] sm:$0xff] %v1804
        $region48: #{tpu_custom_call.1} parent=23 // pred_fallthru
          _
        // Predicated region
        $region49: #{tpu_custom_call.1} parent=23 // pred_check
          %p1821 = pneg %p163
        $region50: #{tpu_custom_call.1} parent=23 // pred_check_branch
          %1823 = sbr.rel (%p1821) target = $region52
        $region51: #{tpu_custom_call.1} parent=23 // pred_region
          %s1824 = smul.addr %s410, 8
          %s1825 = scalar_lea.vmem [#allocation4], %s1824
          %1826 = vst [vmem:[%s1825] sm:$0xff] %v1513
          %1827 = vst [vmem:[%s1825 + $0x8] sm:$0xff] %v1589
          %1828 = vst [vmem:[%s1825 + $0x10] sm:$0xff] %v1665
          %1829 = vst [vmem:[%s1825 + $0x18] sm:$0xff] %v1741
          %1830 = vst [vmem:[%s1825 + $0x20] sm:$0xff] %v1515
          %1831 = vst [vmem:[%s1825 + $0x28] sm:$0xff] %v1591
          %1832 = vst [vmem:[%s1825 + $0x30] sm:$0xff] %v1667
          %1833 = vst [vmem:[%s1825 + $0x38] sm:$0xff] %v1743
          %1834 = vst [vmem:[%s1825 + $0x40] sm:$0xff] %v1518
          %1835 = vst [vmem:[%s1825 + $0x48] sm:$0xff] %v1594
          %1836 = vst [vmem:[%s1825 + $0x50] sm:$0xff] %v1670
          %1837 = vst [vmem:[%s1825 + $0x58] sm:$0xff] %v1746
          %1838 = vst [vmem:[%s1825 + $0x60] sm:$0xff] %v1520
          %1839 = vst [vmem:[%s1825 + $0x68] sm:$0xff] %v1596
          %1840 = vst [vmem:[%s1825 + $0x70] sm:$0xff] %v1672
          %1841 = vst [vmem:[%s1825 + $0x78] sm:$0xff] %v1748
        $region52: #{tpu_custom_call.1} parent=23 // pred_fallthru
          _
        %p1842 = scmp.gt.s32.totalorder %s25, 0
        // Predicated region
        $region53: #{tpu_custom_call.1} parent=23 // pred_check
          %p1843 = pneg %p1842
        $region54: #{tpu_custom_call.1} parent=23 // pred_check_branch
          %1845 = sbr.rel (%p1843) target = $region56
        $region55: #{tpu_custom_call.1} parent=23 // pred_region
          %s1846 = smul.addr %s410, 8
          %s1847 = scalar_lea.vmem [#allocation4], %s1846
          %v1848 = vld [vmem:[%s1847] sm:$0xff]
          %v1849 = vld [vmem:[%s1847 + $0x8] sm:$0xff]
          %v1850 = vld [vmem:[%s1847 + $0x10] sm:$0xff]
          %v1851 = vld [vmem:[%s1847 + $0x18] sm:$0xff]
          %v1852 = vld [vmem:[%s1847 + $0x20] sm:$0xff]
          %v1853 = vld [vmem:[%s1847 + $0x28] sm:$0xff]
          %v1854 = vld [vmem:[%s1847 + $0x30] sm:$0xff]
          %v1855 = vld [vmem:[%s1847 + $0x38] sm:$0xff]
          %v1856 = vld [vmem:[%s1847 + $0x40] sm:$0xff]
          %v1857 = vld [vmem:[%s1847 + $0x48] sm:$0xff]
          %v1858 = vld [vmem:[%s1847 + $0x50] sm:$0xff]
          %v1859 = vld [vmem:[%s1847 + $0x58] sm:$0xff]
          %v1860 = vld [vmem:[%s1847 + $0x60] sm:$0xff]
          %v1861 = vld [vmem:[%s1847 + $0x68] sm:$0xff]
          %v1862 = vld [vmem:[%s1847 + $0x70] sm:$0xff]
          %v1863 = vld [vmem:[%s1847 + $0x78] sm:$0xff]
          %v1864 = vadd.f32 %v1848, %v1513
          %v1865 = vadd.f32 %v1849, %v1589
          %v1866 = vadd.f32 %v1850, %v1665
          %v1867 = vadd.f32 %v1851, %v1741
          %v1868 = vadd.f32 %v1852, %v1515
          %v1869 = vadd.f32 %v1853, %v1591
          %v1870 = vadd.f32 %v1854, %v1667
          %v1871 = vadd.f32 %v1855, %v1743
          %v1872 = vadd.f32 %v1856, %v1518
          %v1873 = vadd.f32 %v1857, %v1594
          %v1874 = vadd.f32 %v1858, %v1670
          %v1875 = vadd.f32 %v1859, %v1746
          %v1876 = vadd.f32 %v1860, %v1520
          %v1877 = vadd.f32 %v1861, %v1596
          %v1878 = vadd.f32 %v1862, %v1672
          %v1879 = vadd.f32 %v1863, %v1748
          %1880 = vst [vmem:[%s1847] sm:$0xff] %v1864
          %1881 = vst [vmem:[%s1847 + $0x8] sm:$0xff] %v1865
          %1882 = vst [vmem:[%s1847 + $0x10] sm:$0xff] %v1866
          %1883 = vst [vmem:[%s1847 + $0x18] sm:$0xff] %v1867
          %1884 = vst [vmem:[%s1847 + $0x20] sm:$0xff] %v1868
          %1885 = vst [vmem:[%s1847 + $0x28] sm:$0xff] %v1869
          %1886 = vst [vmem:[%s1847 + $0x30] sm:$0xff] %v1870
          %1887 = vst [vmem:[%s1847 + $0x38] sm:$0xff] %v1871
          %1888 = vst [vmem:[%s1847 + $0x40] sm:$0xff] %v1872
          %1889 = vst [vmem:[%s1847 + $0x48] sm:$0xff] %v1873
          %1890 = vst [vmem:[%s1847 + $0x50] sm:$0xff] %v1874
          %1891 = vst [vmem:[%s1847 + $0x58] sm:$0xff] %v1875
          %1892 = vst [vmem:[%s1847 + $0x60] sm:$0xff] %v1876
          %1893 = vst [vmem:[%s1847 + $0x68] sm:$0xff] %v1877
          %1894 = vst [vmem:[%s1847 + $0x70] sm:$0xff] %v1878
          %1895 = vst [vmem:[%s1847 + $0x78] sm:$0xff] %v1879
        $region56: #{tpu_custom_call.1} parent=23 // pred_fallthru
          _
        // Predicated region
        $region57: #{tpu_custom_call.1} parent=23 // pred_check
          %p1896 = pneg %p164
        $region58: #{tpu_custom_call.1} parent=23 // pred_check_branch
          %1898 = sbr.rel (%p1896) target = $region60
        $region59: #{tpu_custom_call.1} parent=23 // pred_region
          %v1899 = vld [vmem:[#allocation5] sm:$0xff]
          %v1900 = vld [vmem:[#allocation5 + $0x8] sm:$0xff]
          %v1901 = vld [vmem:[#allocation5 + $0x10] sm:$0xff]
          %v1902 = vld [vmem:[#allocation5 + $0x18] sm:$0xff]
          %v1903 = vld [vmem:[#allocation5 + $0x20] sm:$0xff]
          %v1904 = vld [vmem:[#allocation5 + $0x28] sm:$0xff]
          %v1905 = vld [vmem:[#allocation5 + $0x30] sm:$0xff]
          %v1906 = vld [vmem:[#allocation5 + $0x38] sm:$0xff]
          %v1907 = vld [vmem:[#allocation5 + $0x40] sm:$0xff]
          %v1908 = vld [vmem:[#allocation5 + $0x48] sm:$0xff]
          %v1909 = vld [vmem:[#allocation5 + $0x50] sm:$0xff]
          %v1910 = vld [vmem:[#allocation5 + $0x58] sm:$0xff]
          %v1911 = vld [vmem:[#allocation5 + $0x60] sm:$0xff]
          %v1912 = vld [vmem:[#allocation5 + $0x68] sm:$0xff]
          %v1913 = vld [vmem:[#allocation5 + $0x70] sm:$0xff]
          %v1914 = vld [vmem:[#allocation5 + $0x78] sm:$0xff]
          %s1915 = smul.addr %s398, 8
          %s1916 = scalar_lea.vmem [#allocation10], %s1915
          %v1917 = vld [vmem:[%s1916] sm:$0xff]
          %v1918 = vld [vmem:[%s1916 + $0x8] sm:$0xff]
          %v1919 = vld [vmem:[%s1916 + $0x10] sm:$0xff]
          %v1920 = vld [vmem:[%s1916 + $0x18] sm:$0xff]
          %v1921 = vld [vmem:[%s1916 + $0x20] sm:$0xff]
          %v1922 = vld [vmem:[%s1916 + $0x28] sm:$0xff]
          %v1923 = vld [vmem:[%s1916 + $0x30] sm:$0xff]
          %v1924 = vld [vmem:[%s1916 + $0x38] sm:$0xff]
          %v1925 = vld [vmem:[%s1916 + $0x40] sm:$0xff]
          %v1926 = vld [vmem:[%s1916 + $0x48] sm:$0xff]
          %v1927 = vld [vmem:[%s1916 + $0x50] sm:$0xff]
          %v1928 = vld [vmem:[%s1916 + $0x58] sm:$0xff]
          %v1929 = vld [vmem:[%s1916 + $0x60] sm:$0xff]
          %v1930 = vld [vmem:[%s1916 + $0x68] sm:$0xff]
          %v1931 = vld [vmem:[%s1916 + $0x70] sm:$0xff]
          %v1932 = vld [vmem:[%s1916 + $0x78] sm:$0xff]
          %v1933 = vadd.f32 %v1917, %v1899
          %v1934 = vadd.f32 %v1918, %v1900
          %v1935 = vadd.f32 %v1919, %v1901
          %v1936 = vadd.f32 %v1920, %v1902
          %v1937 = vadd.f32 %v1921, %v1903
          %v1938 = vadd.f32 %v1922, %v1904
          %v1939 = vadd.f32 %v1923, %v1905
          %v1940 = vadd.f32 %v1924, %v1906
          %v1941 = vadd.f32 %v1925, %v1907
          %v1942 = vadd.f32 %v1926, %v1908
          %v1943 = vadd.f32 %v1927, %v1909
          %v1944 = vadd.f32 %v1928, %v1910
          %v1945 = vadd.f32 %v1929, %v1911
          %v1946 = vadd.f32 %v1930, %v1912
          %v1947 = vadd.f32 %v1931, %v1913
          %v1948 = vadd.f32 %v1932, %v1914
          %1949 = vst [vmem:[%s1916] sm:$0xff] %v1933
          %1950 = vst [vmem:[%s1916 + $0x8] sm:$0xff] %v1934
          %1951 = vst [vmem:[%s1916 + $0x10] sm:$0xff] %v1935
          %1952 = vst [vmem:[%s1916 + $0x18] sm:$0xff] %v1936
          %1953 = vst [vmem:[%s1916 + $0x20] sm:$0xff] %v1937
          %1954 = vst [vmem:[%s1916 + $0x28] sm:$0xff] %v1938
          %1955 = vst [vmem:[%s1916 + $0x30] sm:$0xff] %v1939
          %1956 = vst [vmem:[%s1916 + $0x38] sm:$0xff] %v1940
          %1957 = vst [vmem:[%s1916 + $0x40] sm:$0xff] %v1941
          %1958 = vst [vmem:[%s1916 + $0x48] sm:$0xff] %v1942
          %1959 = vst [vmem:[%s1916 + $0x50] sm:$0xff] %v1943
          %1960 = vst [vmem:[%s1916 + $0x58] sm:$0xff] %v1944
          %1961 = vst [vmem:[%s1916 + $0x60] sm:$0xff] %v1945
          %1962 = vst [vmem:[%s1916 + $0x68] sm:$0xff] %v1946
          %1963 = vst [vmem:[%s1916 + $0x70] sm:$0xff] %v1947
          %1964 = vst [vmem:[%s1916 + $0x78] sm:$0xff] %v1948
          %v1965 = vpack.c.bf16 %v1900, %v1899
          %v1966 = vpack.c.bf16 %v1902, %v1901
          %v1967 = vpack.c.bf16 %v1904, %v1903
          %v1968 = vpack.c.bf16 %v1906, %v1905
          %v1969 = vpack.c.bf16 %v1908, %v1907
          %v1970 = vpack.c.bf16 %v1910, %v1909
          %v1971 = vpack.c.bf16 %v1912, %v1911
          %v1972 = vpack.c.bf16 %v1914, %v1913
          %1973 = vst [vmem:[%s401] sm:$0xff] %v1965
          %1974 = vst [vmem:[%s401 + $0x8] sm:$0xff] %v1966
          %1975 = vst [vmem:[%s401 + $0x10] sm:$0xff] %v1967
          %1976 = vst [vmem:[%s401 + $0x18] sm:$0xff] %v1968
          %1977 = vst [vmem:[%s401 + $0x20] sm:$0xff] %v1969
          %1978 = vst [vmem:[%s401 + $0x28] sm:$0xff] %v1970
          %1979 = vst [vmem:[%s401 + $0x30] sm:$0xff] %v1971
          %1980 = vst [vmem:[%s401 + $0x38] sm:$0xff] %v1972
        $region60: #{tpu_custom_call.1} parent=23 // pred_fallthru
          _
        // Predicated region
        $region61: #{tpu_custom_call.1} parent=23 // pred_check
          %p1981 = pneg %p163
        $region62: #{tpu_custom_call.1} parent=23 // pred_check_branch
          %1983 = sbr.rel (%p1981) target = $region64
        $region63: #{tpu_custom_call.1} parent=23 // pred_region
          %s1984 = smul.addr %s410, 8
          %s1985 = scalar_lea.vmem [#allocation4], %s1984
          %v1986 = vld [vmem:[%s1985] sm:$0xff]
          %v1987 = vld [vmem:[%s1985 + $0x8] sm:$0xff]
          %v1988 = vld [vmem:[%s1985 + $0x10] sm:$0xff]
          %v1989 = vld [vmem:[%s1985 + $0x18] sm:$0xff]
          %v1990 = vld [vmem:[%s1985 + $0x20] sm:$0xff]
          %v1991 = vld [vmem:[%s1985 + $0x28] sm:$0xff]
          %v1992 = vld [vmem:[%s1985 + $0x30] sm:$0xff]
          %v1993 = vld [vmem:[%s1985 + $0x38] sm:$0xff]
          %v1994 = vld [vmem:[%s1985 + $0x40] sm:$0xff]
          %v1995 = vld [vmem:[%s1985 + $0x48] sm:$0xff]
          %v1996 = vld [vmem:[%s1985 + $0x50] sm:$0xff]
          %v1997 = vld [vmem:[%s1985 + $0x58] sm:$0xff]
          %v1998 = vld [vmem:[%s1985 + $0x60] sm:$0xff]
          %v1999 = vld [vmem:[%s1985 + $0x68] sm:$0xff]
          %v2000 = vld [vmem:[%s1985 + $0x70] sm:$0xff]
          %v2001 = vld [vmem:[%s1985 + $0x78] sm:$0xff]
          %s2002 = smul.addr %s410, 8
          %s2003 = scalar_lea.vmem [#allocation11], %s2002
          %v2004 = vld [vmem:[%s2003] sm:$0xff]
          %v2005 = vld [vmem:[%s2003 + $0x8] sm:$0xff]
          %v2006 = vld [vmem:[%s2003 + $0x10] sm:$0xff]
          %v2007 = vld [vmem:[%s2003 + $0x18] sm:$0xff]
          %v2008 = vld [vmem:[%s2003 + $0x20] sm:$0xff]
          %v2009 = vld [vmem:[%s2003 + $0x28] sm:$0xff]
          %v2010 = vld [vmem:[%s2003 + $0x30] sm:$0xff]
          %v2011 = vld [vmem:[%s2003 + $0x38] sm:$0xff]
          %v2012 = vld [vmem:[%s2003 + $0x40] sm:$0xff]
          %v2013 = vld [vmem:[%s2003 + $0x48] sm:$0xff]
          %v2014 = vld [vmem:[%s2003 + $0x50] sm:$0xff]
          %v2015 = vld [vmem:[%s2003 + $0x58] sm:$0xff]
          %v2016 = vld [vmem:[%s2003 + $0x60] sm:$0xff]
          %v2017 = vld [vmem:[%s2003 + $0x68] sm:$0xff]
          %v2018 = vld [vmem:[%s2003 + $0x70] sm:$0xff]
          %v2019 = vld [vmem:[%s2003 + $0x78] sm:$0xff]
          %v2020 = vadd.f32 %v2004, %v1986
          %v2021 = vadd.f32 %v2005, %v1987
          %v2022 = vadd.f32 %v2006, %v1988
          %v2023 = vadd.f32 %v2007, %v1989
          %v2024 = vadd.f32 %v2008, %v1990
          %v2025 = vadd.f32 %v2009, %v1991
          %v2026 = vadd.f32 %v2010, %v1992
          %v2027 = vadd.f32 %v2011, %v1993
          %v2028 = vadd.f32 %v2012, %v1994
          %v2029 = vadd.f32 %v2013, %v1995
          %v2030 = vadd.f32 %v2014, %v1996
          %v2031 = vadd.f32 %v2015, %v1997
          %v2032 = vadd.f32 %v2016, %v1998
          %v2033 = vadd.f32 %v2017, %v1999
          %v2034 = vadd.f32 %v2018, %v2000
          %v2035 = vadd.f32 %v2019, %v2001
          %2036 = vst [vmem:[%s2003] sm:$0xff] %v2020
          %2037 = vst [vmem:[%s2003 + $0x8] sm:$0xff] %v2021
          %2038 = vst [vmem:[%s2003 + $0x10] sm:$0xff] %v2022
          %2039 = vst [vmem:[%s2003 + $0x18] sm:$0xff] %v2023
          %2040 = vst [vmem:[%s2003 + $0x20] sm:$0xff] %v2024
          %2041 = vst [vmem:[%s2003 + $0x28] sm:$0xff] %v2025
          %2042 = vst [vmem:[%s2003 + $0x30] sm:$0xff] %v2026
          %2043 = vst [vmem:[%s2003 + $0x38] sm:$0xff] %v2027
          %2044 = vst [vmem:[%s2003 + $0x40] sm:$0xff] %v2028
          %2045 = vst [vmem:[%s2003 + $0x48] sm:$0xff] %v2029
          %2046 = vst [vmem:[%s2003 + $0x50] sm:$0xff] %v2030
          %2047 = vst [vmem:[%s2003 + $0x58] sm:$0xff] %v2031
          %2048 = vst [vmem:[%s2003 + $0x60] sm:$0xff] %v2032
          %2049 = vst [vmem:[%s2003 + $0x68] sm:$0xff] %v2033
          %2050 = vst [vmem:[%s2003 + $0x70] sm:$0xff] %v2034
          %2051 = vst [vmem:[%s2003 + $0x78] sm:$0xff] %v2035
          %v2052 = vpack.c.bf16 %v1987, %v1986
          %v2053 = vpack.c.bf16 %v1989, %v1988
          %v2054 = vpack.c.bf16 %v1991, %v1990
          %v2055 = vpack.c.bf16 %v1993, %v1992
          %v2056 = vpack.c.bf16 %v1995, %v1994
          %v2057 = vpack.c.bf16 %v1997, %v1996
          %v2058 = vpack.c.bf16 %v1999, %v1998
          %v2059 = vpack.c.bf16 %v2001, %v2000
          %2060 = vst [vmem:[%s413] sm:$0xff] %v2052
          %2061 = vst [vmem:[%s413 + $0x8] sm:$0xff] %v2053
          %2062 = vst [vmem:[%s413 + $0x10] sm:$0xff] %v2054
          %2063 = vst [vmem:[%s413 + $0x18] sm:$0xff] %v2055
          %2064 = vst [vmem:[%s413 + $0x20] sm:$0xff] %v2056
          %2065 = vst [vmem:[%s413 + $0x28] sm:$0xff] %v2057
          %2066 = vst [vmem:[%s413 + $0x30] sm:$0xff] %v2058
          %2067 = vst [vmem:[%s413 + $0x38] sm:$0xff] %v2059
        $region64: #{tpu_custom_call.1} parent=23 // pred_fallthru
          _
        %p2068 = scmp.eq.s32.totalorder %s24, 1
        %p2069 = pnand %p2068, %p166
        %p2070 = pneg %p2069
        // Predicated region
        $region65: #{tpu_custom_call.1} parent=23 // pred_check
          _
        $region66: #{tpu_custom_call.1} parent=23 // pred_check_branch
          %2072 = sbr.rel (%p2069) target = $region68
        $region67: #{tpu_custom_call.1} parent=23 // pred_region
          %v2073 = vld [vmem:[#allocation10] sm:$0xff]
          %v2074 = vld [vmem:[#allocation10 + $0x8] sm:$0xff]
          %v2075 = vld [vmem:[#allocation10 + $0x10] sm:$0xff]
          %v2076 = vld [vmem:[#allocation10 + $0x18] sm:$0xff]
          %v2077 = vld [vmem:[#allocation10 + $0x20] sm:$0xff]
          %v2078 = vld [vmem:[#allocation10 + $0x28] sm:$0xff]
          %v2079 = vld [vmem:[#allocation10 + $0x30] sm:$0xff]
          %v2080 = vld [vmem:[#allocation10 + $0x38] sm:$0xff]
          %v2081 = vld [vmem:[#allocation10 + $0x40] sm:$0xff]
          %v2082 = vld [vmem:[#allocation10 + $0x48] sm:$0xff]
          %v2083 = vld [vmem:[#allocation10 + $0x50] sm:$0xff]
          %v2084 = vld [vmem:[#allocation10 + $0x58] sm:$0xff]
          %v2085 = vld [vmem:[#allocation10 + $0x60] sm:$0xff]
          %v2086 = vld [vmem:[#allocation10 + $0x68] sm:$0xff]
          %v2087 = vld [vmem:[#allocation10 + $0x70] sm:$0xff]
          %v2088 = vld [vmem:[#allocation10 + $0x78] sm:$0xff]
          %v2089 = vmul.f32 %v2073, 0.33333334
          %v2090 = vmul.f32 %v2074, 0.33333334
          %v2091 = vmul.f32 %v2075, 0.33333334
          %v2092 = vmul.f32 %v2076, 0.33333334
          %v2093 = vmul.f32 %v2077, 0.33333334
          %v2094 = vmul.f32 %v2078, 0.33333334
          %v2095 = vmul.f32 %v2079, 0.33333334
          %v2096 = vmul.f32 %v2080, 0.33333334
          %v2097 = vmul.f32 %v2081, 0.33333334
          %v2098 = vmul.f32 %v2082, 0.33333334
          %v2099 = vmul.f32 %v2083, 0.33333334
          %v2100 = vmul.f32 %v2084, 0.33333334
          %v2101 = vmul.f32 %v2085, 0.33333334
          %v2102 = vmul.f32 %v2086, 0.33333334
          %v2103 = vmul.f32 %v2087, 0.33333334
          %v2104 = vmul.f32 %v2088, 0.33333334
          %2105 = vst [vmem:[#allocation10] sm:$0xff] %v2089
          %2106 = vst [vmem:[#allocation10 + $0x8] sm:$0xff] %v2090
          %2107 = vst [vmem:[#allocation10 + $0x10] sm:$0xff] %v2091
          %2108 = vst [vmem:[#allocation10 + $0x18] sm:$0xff] %v2092
          %2109 = vst [vmem:[#allocation10 + $0x20] sm:$0xff] %v2093
          %2110 = vst [vmem:[#allocation10 + $0x28] sm:$0xff] %v2094
          %2111 = vst [vmem:[#allocation10 + $0x30] sm:$0xff] %v2095
          %2112 = vst [vmem:[#allocation10 + $0x38] sm:$0xff] %v2096
          %2113 = vst [vmem:[#allocation10 + $0x40] sm:$0xff] %v2097
          %2114 = vst [vmem:[#allocation10 + $0x48] sm:$0xff] %v2098
          %2115 = vst [vmem:[#allocation10 + $0x50] sm:$0xff] %v2099
          %2116 = vst [vmem:[#allocation10 + $0x58] sm:$0xff] %v2100
          %2117 = vst [vmem:[#allocation10 + $0x60] sm:$0xff] %v2101
          %2118 = vst [vmem:[#allocation10 + $0x68] sm:$0xff] %v2102
          %2119 = vst [vmem:[#allocation10 + $0x70] sm:$0xff] %v2103
          %2120 = vst [vmem:[#allocation10 + $0x78] sm:$0xff] %v2104
          %v2121 = vld [vmem:[#allocation11] sm:$0xff]
          %v2122 = vld [vmem:[#allocation11 + $0x8] sm:$0xff]
          %v2123 = vld [vmem:[#allocation11 + $0x10] sm:$0xff]
          %v2124 = vld [vmem:[#allocation11 + $0x18] sm:$0xff]
          %v2125 = vld [vmem:[#allocation11 + $0x20] sm:$0xff]
          %v2126 = vld [vmem:[#allocation11 + $0x28] sm:$0xff]
          %v2127 = vld [vmem:[#allocation11 + $0x30] sm:$0xff]
          %v2128 = vld [vmem:[#allocation11 + $0x38] sm:$0xff]
          %v2129 = vld [vmem:[#allocation11 + $0x40] sm:$0xff]
          %v2130 = vld [vmem:[#allocation11 + $0x48] sm:$0xff]
          %v2131 = vld [vmem:[#allocation11 + $0x50] sm:$0xff]
          %v2132 = vld [vmem:[#allocation11 + $0x58] sm:$0xff]
          %v2133 = vld [vmem:[#allocation11 + $0x60] sm:$0xff]
          %v2134 = vld [vmem:[#allocation11 + $0x68] sm:$0xff]
          %v2135 = vld [vmem:[#allocation11 + $0x70] sm:$0xff]
          %v2136 = vld [vmem:[#allocation11 + $0x78] sm:$0xff]
          %v2137 = vmul.f32 %v2121, 0.33333334
          %v2138 = vmul.f32 %v2122, 0.33333334
          %v2139 = vmul.f32 %v2123, 0.33333334
          %v2140 = vmul.f32 %v2124, 0.33333334
          %v2141 = vmul.f32 %v2125, 0.33333334
          %v2142 = vmul.f32 %v2126, 0.33333334
          %v2143 = vmul.f32 %v2127, 0.33333334
          %v2144 = vmul.f32 %v2128, 0.33333334
          %v2145 = vmul.f32 %v2129, 0.33333334
          %v2146 = vmul.f32 %v2130, 0.33333334
          %v2147 = vmul.f32 %v2131, 0.33333334
          %v2148 = vmul.f32 %v2132, 0.33333334
          %v2149 = vmul.f32 %v2133, 0.33333334
          %v2150 = vmul.f32 %v2134, 0.33333334
          %v2151 = vmul.f32 %v2135, 0.33333334
          %v2152 = vmul.f32 %v2136, 0.33333334
          %2153 = vst [vmem:[#allocation11] sm:$0xff] %v2137
          %2154 = vst [vmem:[#allocation11 + $0x8] sm:$0xff] %v2138
          %2155 = vst [vmem:[#allocation11 + $0x10] sm:$0xff] %v2139
          %2156 = vst [vmem:[#allocation11 + $0x18] sm:$0xff] %v2140
          %2157 = vst [vmem:[#allocation11 + $0x20] sm:$0xff] %v2141
          %2158 = vst [vmem:[#allocation11 + $0x28] sm:$0xff] %v2142
          %2159 = vst [vmem:[#allocation11 + $0x30] sm:$0xff] %v2143
          %2160 = vst [vmem:[#allocation11 + $0x38] sm:$0xff] %v2144
          %2161 = vst [vmem:[#allocation11 + $0x40] sm:$0xff] %v2145
          %2162 = vst [vmem:[#allocation11 + $0x48] sm:$0xff] %v2146
          %2163 = vst [vmem:[#allocation11 + $0x50] sm:$0xff] %v2147
          %2164 = vst [vmem:[#allocation11 + $0x58] sm:$0xff] %v2148
          %2165 = vst [vmem:[#allocation11 + $0x60] sm:$0xff] %v2149
          %2166 = vst [vmem:[#allocation11 + $0x68] sm:$0xff] %v2150
          %2167 = vst [vmem:[#allocation11 + $0x70] sm:$0xff] %v2151
          %2168 = vst [vmem:[#allocation11 + $0x78] sm:$0xff] %v2152
        $region68: #{tpu_custom_call.1} parent=23 // pred_fallthru
          _
        // Predicated region
        $region69: #{tpu_custom_call.1} parent=23 // pred_check
          %p2169 = pneg %p79
        $region70: #{tpu_custom_call.1} parent=23 // pred_check_branch
          %2171 = sbr.rel (%p2169) target = $region72
        $region71: #{tpu_custom_call.1} parent=23 // pred_region
          %2173 = vsyncadd [#allocation9], 0
          %s2174 = sshll.u32 [#allocation10], 4
          %s2175 = int_to_ptr.vmem [resolvable:$true] %s2174
          %s2176 = sshll.u32 %s3, 4
          %s2177 = int_to_ptr.hbm [resolvable:$true] %s2176
          %2182 = dma.vmem_to_hbm [thread:$0]  %s2175, 2048, %s2177, [#allocation9], 512, 512, 32
        $region72: #{tpu_custom_call.1} parent=23 // pred_fallthru
          _
        // Predicated region
        $region73: #{tpu_custom_call.1} parent=23 // pred_check
          %p2183 = pneg %p100
        $region74: #{tpu_custom_call.1} parent=23 // pred_check_branch
          %2185 = sbr.rel (%p2183) target = $region76
        $region75: #{tpu_custom_call.1} parent=23 // pred_region
          %2187 = vsyncadd [#allocation12], 0
          %s2188 = sshll.u32 [#allocation11], 4
          %s2189 = int_to_ptr.vmem [resolvable:$true] %s2188
          %s2190 = sshll.u32 %s4, 4
          %s2191 = int_to_ptr.hbm [resolvable:$true] %s2190
          %2196 = dma.vmem_to_hbm [thread:$0]  %s2189, 2048, %s2191, [#allocation12], 512, 512, 32
        $region76: #{tpu_custom_call.1} parent=23 // pred_fallthru
          _
        // Predicated region
        $region77: #{tpu_custom_call.1} parent=23 // pred_check
          %p2197 = pneg %p79
        $region78: #{tpu_custom_call.1} parent=23 // pred_check_branch
          %2199 = sbr.rel (%p2197) target = $region80
        $region79: #{tpu_custom_call.1} parent=23 // pred_region
          %2201 = dma.done [#allocation9], 2048
        $region80: #{tpu_custom_call.1} parent=23 // pred_fallthru
          _
        // Predicated region
        $region81: #{tpu_custom_call.1} parent=23 // pred_check
          %p2202 = pneg %p100
        $region82: #{tpu_custom_call.1} parent=23 // pred_check_branch
          %2204 = sbr.rel (%p2202) target = $region84
        $region83: #{tpu_custom_call.1} parent=23 // pred_region
          %2206 = dma.done [#allocation12], 2048
        $region84: #{tpu_custom_call.1} parent=23 // pred_fallthru
          _
      $region24: #{tpu_custom_call.1} parent=5 // pred_fallthru
        _
      %p2207 = scmp.le.s32.totalorder 2, %s14
      // Predicated region
      $region85: #{tpu_custom_call.1} parent=5 // pred_check
        %p2208 = pneg %p2207
      $region86: #{tpu_custom_call.1} parent=5 // pred_check_branch
        %2210 = sbr.rel (%p2208) target = $region88
      $region87: #{tpu_custom_call.1} parent=5 // pred_region
        %s2211 = ssub.s32 %s14, 2
      $region88: #{tpu_custom_call.1} parent=5 // pred_fallthru
        _
    $region6: #{tpu_custom_call.1} parent=1 // loop_footer
      %s18 = sadd.s32 1, %s14
    $region7: #{tpu_custom_call.1} parent=1 // loop_footer_branch
      %13 = sbr.rel target = $region3
    $region8: #{tpu_custom_call.1} parent=1 // loop_exit
      _
    %2212 = vsyncpa [#allocation8], 1
    %s2213 = scalar_lea.sflag [#allocation8], 1
    %2214 = vsyncpa %s2213, 1
    %2215 = vsyncpa [#allocation9], 1
    %s2216 = scalar_lea.sflag [#allocation9], 1
    %2217 = vsyncpa %s2216, 1
    %2218 = vsyncpa [#allocation12], 1
  %2219 = vsyncmov [#allocation6]
  %s2220 = vpop.sfrf %2219
  %p2221 = scmp.eq.s32.totalorder %s2220, 0
  %p2222 = pneg %p2221
  %2224 = shalt.err (%p2222)
  %s2225 = scalar_lea.sflag [#allocation6], 1
  %2226 = vsyncmov %s2225
  %s2227 = vpop.sfrf %2226
  %p2228 = scmp.eq.s32.totalorder %s2227, 0
  %p2229 = pneg %p2228
  %2231 = shalt.err (%p2229)

</llo_original>
